<compile_context>
chip_gen: v7x
topology: tpu7x:2x2x1
jax: 0.10.0
libtpu: 0.0.40
codegen_flags: <defaults>
</compile_context>

<pallas_src>
import functools

import jax
import jax.numpy as jnp
import numpy as np
from jax import lax
from jax.experimental import pallas as pl
from jax.experimental.pallas import tpu as pltpu


# ------------------------------ fused kernel --------------------------------


def fused_network_kernel(x_ref, w0_ref, r2_ref, r5_ref, w9_ref, o_ref,
                         s2_ref, s5_ref, flat_ref, *, bt):
    """One grid step == one batch tile (bt samples); forward stays on-chip."""
    f32 = jnp.float32
    zrow = jnp.zeros((1, 64), f32)

    # --- layer 0: Linear 64 -> 1024 (bias=False), whole tile at once (M=bt).
    #     w0p columns pre-permuted so col = r*64 + w*4 + c, where scratch row r
    #     holds image row h_order[r] = [1,3,...,15, 0,2,...,14]  (odd rows
    #     first, even rows second -> makes the 2x2 pool a contiguous max).
    a0 = jnp.dot(x_ref[...], w0_ref[...], preferred_element_type=f32)  # (bt,1024)

    # --- layer 1: Unflatten -> (4,16,16) NCHW, realised as a lane->sublane
    #     scatter into the H-padded conv-2 scratch.  Per-sample row layout:
    #     [pad, h1,h3,...,h15, h0,h2,...,h14, pad]  (18 rows x 64 lanes).
    for b in range(bt):
        o = 18 * b
        s2_ref[o:o + 1, :] = zrow
        s2_ref[o + 17:o + 18, :] = zrow
        for r in range(16):
            s2_ref[o + 1 + r:o + 2 + r, :] = a0[b:b + 1, 64 * r:64 * (r + 1)]

    # --- layer 2: Conv2d 4->8, k=3, pad=1 as TWO banded matmuls (even / odd
    #     output rows), samples stacked along M.  The odd/even scratch row
    #     order makes every kh-shifted slice a contiguous sublane slice.
    lhs_e, lhs_o = [], []
    for b in range(bt):
        xp = s2_ref[18 * b:18 * (b + 1), :]        # (18, 64)
        a0_ = xp[0:8]      # [pad, h1, h3, ..., h13]   (row h-1 of even outputs)
        a1_ = xp[1:9]      # [h1, h3, ..., h15]        (row h+1 even / h odd)
        b0_ = xp[9:17]     # [h0, h2, ..., h14]        (row h even / h-1 odd)
        b1_ = xp[10:18]    # [h2, ..., h14, pad]       (row h+1 of odd outputs)
        lhs_e.append(jnp.concatenate([a0_, b0_, a1_], axis=1))   # h = 0,2,..,14
        lhs_o.append(jnp.concatenate([b0_, a1_, b1_], axis=1))   # h = 1,3,..,15
    a2e = jnp.dot(jnp.concatenate(lhs_e, axis=0), r2_ref[...],
                  preferred_element_type=f32)      # (bt*8, 128) even conv rows
    a2o = jnp.dot(jnp.concatenate(lhs_o, axis=0), r2_ref[...],
                  preferred_element_type=f32)      # (bt*8, 128) odd  conv rows

    # --- layers 3+4: ReLU + MaxPool2d(2).  H-pool = max(even, odd) rows;
    #     W-pool = max of the [even-w | odd-w] lane halves (r2 columns were
    #     permuted offline).  ReLU commutes with max -> applied once, last.
    hp = jnp.maximum(a2e, a2o)                                    # (bt*8, 128)
    pooled = jnp.maximum(jnp.maximum(hp[:, :64], hp[:, 64:]), 0.0)  # (bt*8, 64)

    # --- layer 5: Conv2d 8->16, k=3, pad=1 (banded matmul, normal row order).
    for b in range(bt):
        o = 10 * b
        s5_ref[o:o + 1, :] = zrow
        s5_ref[o + 9:o + 10, :] = zrow
        s5_ref[o + 1:o + 9, :] = pooled[8 * b:8 * (b + 1), :]
    lhs5 = []
    for b in range(bt):
        yp = s5_ref[10 * b:10 * (b + 1), :]        # (10, 64)
        lhs5.append(jnp.concatenate([yp[0:8], yp[1:9], yp[2:10]], axis=1))
    a5 = jnp.dot(jnp.concatenate(lhs5, axis=0), r5_ref[...],
                 preferred_element_type=f32)       # (bt*8, 128)

    # --- layer 6: Tanh (f32: v5e VPU/EUP have no bf16).
    a6 = jnp.tanh(a5)                              # rows b*8+h, cols w*16+c

    # --- layers 7+8+9: upsample + NCHW flatten are folded into w9fold
    #     offline, so all that remains is laying a6 out as (bt, 1024)
    #     (flat col = h*128 + w*16 + c) and one K=1024, N=16 matmul.
    for b in range(bt):
        for h in range(8):
            flat_ref[b:b + 1, 128 * h:128 * (h + 1)] = \
                a6[8 * b + h:8 * b + h + 1, :]
    o_ref[...] = jnp.dot(flat_ref[...], w9_ref[...],
                         preferred_element_type=f32)              # (bt, 16)


# --------------------------- forward-pass wrapper ----------------------------


def network_forward(x, prep):
    """Full Network forward as a single fused Pallas call (grid = batch tiles)."""
    B = x.shape[0]
    bt = B
    for cand in (8, 4, 2, 1):          # largest batch tile <= 8 dividing B
        if B % cand == 0:
            bt = min(cand, B)
            break
    kernel = functools.partial(fused_network_kernel, bt=bt)
    out = pl.pallas_call(
        kernel,
        out_shape=jax.ShapeDtypeStruct((B, 16), jnp.float32),
        grid_spec=pltpu.PrefetchScalarGridSpec(
            num_scalar_prefetch=0,
            grid=(B // bt,),
            in_specs=[
                pl.BlockSpec((bt, 64), lambda i: (i, 0)),      # x (batch tile)
                pl.BlockSpec((64, 1024), lambda i: (0, 0)),    # w0p
                pl.BlockSpec((192, 128), lambda i: (0, 0)),    # conv-2 band
                pl.BlockSpec((192, 128), lambda i: (0, 0)),    # conv-5 band
                pl.BlockSpec((1024, 16), lambda i: (0, 0)),    # folded dense-9
            ],
            out_specs=pl.BlockSpec((bt, 16), lambda i: (i, 0)),
            scratch_shapes=[
                pltpu.VMEM((bt * 18, 64), jnp.float32),   # H-padded conv-2 in
                pltpu.VMEM((bt * 10, 64), jnp.float32),   # H-padded conv-5 in
                pltpu.VMEM((bt, 1024), jnp.float32),      # flattened conv-5 out
            ],
        ),
        compiler_params=pltpu.CompilerParams(
            dimension_semantics=("parallel",)),        # independent batch tiles
    )(x, prep["w0p"], prep["r2p"], prep["r5"], prep["w9f"])
    return out[:, :10]


# --------------------- one-time offline weight preprocessing -----------------


def _conv_band_matrix(w_oihw, W, Cin, Cout):
    """OIHW 3x3 weight -> (3*W*Cin, W*Cout) band matrix so that, in the
    (H, W*C) layout, conv(x) == concat_kh(xpad_row[h-1+kh]) @ R  (H padding is
    the zero border rows in the kernel scratch, W padding is the zeros of R)."""
    w = np.asarray(w_oihw, np.float32)
    R = np.zeros((3 * W * Cin, W * Cout), np.float32)
    for kh in range(3):
        for kw in range(3):
            blk = w[:, :, kh, kw].T                       # (Cin, Cout)
            for wo in range(W):
                wi = wo + kw - 1
                if 0 <= wi < W:
                    R[(kh * W + wi) * Cin:(kh * W + wi + 1) * Cin,
                      wo * Cout:(wo + 1) * Cout] = blk
    return R


def preprocess_params(params):
    """Hoist every transpose / permutation / fold / pad out of the forward."""
    w0 = np.asarray(params["w0"], np.float32)   # (1024, 64)   Linear (out, in)
    w2 = np.asarray(params["w2"], np.float32)   # (8, 4, 3, 3) OIHW
    w5 = np.asarray(params["w5"], np.float32)   # (16, 8, 3, 3)
    w9 = np.asarray(params["w9"], np.float32)   # (10, 4096)

    # dense-0: absorb unflatten(NCHW) + NCHW->NHWC and the odd/even H-row
    # reorder; output col = r*64 + w*4 + c with image row h_order[r].
    h_order = np.concatenate([np.arange(1, 16, 2), np.arange(0, 16, 2)])
    w0p = (w0.reshape(4, 16, 16, 64)[:, h_order, :, :]
             .transpose(3, 1, 2, 0).reshape(64, 1024))

    # conv-2 band matrix, output columns permuted to [even-w | odd-w] so the
    # W-pool becomes max of the two 64-lane halves.
    r2 = _conv_band_matrix(w2, W=16, Cin=4, Cout=8)               # (192, 128)
    w_order = np.concatenate([np.arange(0, 16, 2), np.arange(1, 16, 2)])
    r2p = r2.reshape(192, 16, 8)[:, w_order, :].reshape(192, 128)

    r5 = _conv_band_matrix(w5, W=8, Cin=8, Cout=16)               # (192, 128)

    # dense-9: fold the nearest-x2 upsample (sum the 4 taps that copy each
    # pre-upsample pixel) and the NCHW flatten order into the weight; keep
    # only 16 output lanes (10 real + 6 zero).
    w9s = w9.reshape(10, 16, 8, 2, 8, 2).sum(axis=(3, 5))         # (n, c, h, w)
    w9f = w9s.transpose(2, 3, 1, 0).reshape(1024, 10)             # row=h*128+w*16+c
    w9f = np.pad(w9f, ((0, 0), (0, 6)))                           # (1024, 16)

    return {"w0p": jnp.asarray(w0p), "r2p": jnp.asarray(r2p),
            "r5": jnp.asarray(r5), "w9f": jnp.asarray(w9f)}


# -------------------- pure-JAX reference (PyTorch semantics) -----------------


def reference_forward(x, params):
    B = x.shape[0]
    act = x @ params["w0"].T
    act = act.reshape(B, 4, 16, 16)
    act = lax.conv_general_dilated(act, params["w2"], (1, 1), "SAME",
                                   dimension_numbers=("NCHW", "OIHW", "NCHW"))
    act = jnp.maximum(act, 0.0)
    act = lax.reduce_window(act, -jnp.inf, lax.max,
                            (1, 1, 2, 2), (1, 1, 2, 2), "VALID")
    act = lax.conv_general_dilated(act, params["w5"], (1, 1), "SAME",
                                   dimension_numbers=("NCHW", "OIHW", "NCHW"))
    act = jnp.tanh(act)
    act = jnp.repeat(jnp.repeat(act, 2, axis=2), 2, axis=3)
    act = act.reshape(B, -1)
    return act @ params["w9"].T


if __name__ == "__main__":
    key = jax.random.PRNGKey(0)
    kx, k0, k2, k5, k9 = jax.random.split(key, 5)
    # Deterministic parameter init in PyTorch shapes (bias=False everywhere).
    params = {
        "w0": jax.random.normal(k0, (1024, 64), jnp.float32) * 0.05,
        "w2": jax.random.normal(k2, (8, 4, 3, 3), jnp.float32) * 0.10,
        "w5": jax.random.normal(k5, (16, 8, 3, 3), jnp.float32) * 0.10,
        "w9": jax.random.normal(k9, (10, 4096), jnp.float32) * 0.02,
    }
    x = jax.random.normal(kx, (2, 64), jnp.float32)

    prep = preprocess_params(params)                  # one-time, offline
    fwd = jax.jit(functools.partial(network_forward, prep=prep))
    out = fwd(x)
    jax.block_until_ready(out)

    ref = reference_forward(x, params)
    np.testing.assert_allclose(np.asarray(out), np.asarray(ref),
                               rtol=2e-3, atol=2e-3)
    assert out.shape == (2, 10) and out.dtype == jnp.float32
    print("KERNEL_OK")
</pallas_src>

<mosaic_0001>
module attributes {stable_mosaic.version = 11 : i64} {
  func.func @fused_network_kernel(%arg0: i32, %arg1: memref<2x64xf32, #tpu.memory_space<vmem>>, %arg2: memref<64x1024xf32, #tpu.memory_space<vmem>>, %arg3: memref<192x128xf32, #tpu.memory_space<vmem>>, %arg4: memref<192x128xf32, #tpu.memory_space<vmem>>, %arg5: memref<1024x16xf32, #tpu.memory_space<vmem>>, %arg6: memref<2x16xf32, #tpu.memory_space<vmem>>, %arg7: memref<36x64xf32, #tpu.memory_space<vmem>>, %arg8: memref<20x64xf32, #tpu.memory_space<vmem>>, %arg9: memref<2x1024xf32, #tpu.memory_space<vmem>>) attributes {dimension_semantics = [#tpu.dimension_semantics<parallel>], iteration_bounds = array<i64: 1>, scalar_prefetch = 0 : i64, scratch_operands = 3 : i64, tpu.core_type = #tpu.core_type<tc>, window_params = [{transform_indices = @transform_0, window_bounds = array<i64: 2, 64>}, {pipeline_mode = #tpu.pipeline_mode<synchronous>, transform_indices = @transform_1, window_bounds = array<i64: 64, 1024>}, {pipeline_mode = #tpu.pipeline_mode<synchronous>, transform_indices = @transform_2, window_bounds = array<i64: 192, 128>}, {pipeline_mode = #tpu.pipeline_mode<synchronous>, transform_indices = @transform_3, window_bounds = array<i64: 192, 128>}, {pipeline_mode = #tpu.pipeline_mode<synchronous>, transform_indices = @transform_4, window_bounds = array<i64: 1024, 16>}, {transform_indices = @transform_5, window_bounds = array<i64: 2, 16>}]} {
    %cst = arith.constant 0.000000e+00 : f32
    %0 = vector.broadcast %cst : f32 to vector<1x64xf32>
    %c0 = arith.constant 0 : index
    %c0_0 = arith.constant 0 : index
    %1 = vector.load %arg1[%c0, %c0_0] : memref<2x64xf32, #tpu.memory_space<vmem>>, vector<2x64xf32>
    %c0_1 = arith.constant 0 : index
    %c0_2 = arith.constant 0 : index
    %2 = vector.load %arg2[%c0_1, %c0_2] : memref<64x1024xf32, #tpu.memory_space<vmem>>, vector<64x1024xf32>
    %cst_3 = arith.constant dense<0.000000e+00> : vector<2x1024xf32>
    %3 = tpu.matmul %1, %2, %cst_3 {dimension_numbers = #tpu.dot_dimension_numbers<[1], [0], [0], [1], [0, 0, 1, 1], [], []>} : vector<2x64xf32>, vector<64x1024xf32>, vector<2x1024xf32> -> vector<2x1024xf32>
    %c0_4 = arith.constant 0 : index
    %c0_5 = arith.constant 0 : index
    %4 = vector.load %arg7[%c0_4, %c0_5] : memref<36x64xf32, #tpu.memory_space<vmem>>, vector<1x64xf32>
    tpu.vector_store %arg7[%c0_4, %c0_5], %0 {strides = array<i32>} : memref<36x64xf32, #tpu.memory_space<vmem>>, vector<1x64xf32>,
    %c17 = arith.constant 17 : index
    %c0_6 = arith.constant 0 : index
    %5 = vector.load %arg7[%c17, %c0_6] : memref<36x64xf32, #tpu.memory_space<vmem>>, vector<1x64xf32>
    tpu.vector_store %arg7[%c17, %c0_6], %0 {strides = array<i32>} : memref<36x64xf32, #tpu.memory_space<vmem>>, vector<1x64xf32>,
    %6 = vector.extract_strided_slice %3 {offsets = [0, 0], sizes = [1, 64], strides = [1, 1]} : vector<2x1024xf32> to vector<1x64xf32>
    %c1 = arith.constant 1 : index
    %c0_7 = arith.constant 0 : index
    %7 = vector.load %arg7[%c1, %c0_7] : memref<36x64xf32, #tpu.memory_space<vmem>>, vector<1x64xf32>
    tpu.vector_store %arg7[%c1, %c0_7], %6 {strides = array<i32>} : memref<36x64xf32, #tpu.memory_space<vmem>>, vector<1x64xf32>,
    %8 = vector.extract_strided_slice %3 {offsets = [0, 64], sizes = [1, 64], strides = [1, 1]} : vector<2x1024xf32> to vector<1x64xf32>
    %c2 = arith.constant 2 : index
    %c0_8 = arith.constant 0 : index
    %9 = vector.load %arg7[%c2, %c0_8] : memref<36x64xf32, #tpu.memory_space<vmem>>, vector<1x64xf32>
    tpu.vector_store %arg7[%c2, %c0_8], %8 {strides = array<i32>} : memref<36x64xf32, #tpu.memory_space<vmem>>, vector<1x64xf32>,
    %10 = vector.extract_strided_slice %3 {offsets = [0, 128], sizes = [1, 64], strides = [1, 1]} : vector<2x1024xf32> to vector<1x64xf32>
    %c3 = arith.constant 3 : index
    %c0_9 = arith.constant 0 : index
    %11 = vector.load %arg7[%c3, %c0_9] : memref<36x64xf32, #tpu.memory_space<vmem>>, vector<1x64xf32>
    tpu.vector_store %arg7[%c3, %c0_9], %10 {strides = array<i32>} : memref<36x64xf32, #tpu.memory_space<vmem>>, vector<1x64xf32>,
    %12 = vector.extract_strided_slice %3 {offsets = [0, 192], sizes = [1, 64], strides = [1, 1]} : vector<2x1024xf32> to vector<1x64xf32>
    %c4 = arith.constant 4 : index
    %c0_10 = arith.constant 0 : index
    %13 = vector.load %arg7[%c4, %c0_10] : memref<36x64xf32, #tpu.memory_space<vmem>>, vector<1x64xf32>
    tpu.vector_store %arg7[%c4, %c0_10], %12 {strides = array<i32>} : memref<36x64xf32, #tpu.memory_space<vmem>>, vector<1x64xf32>,
    %14 = vector.extract_strided_slice %3 {offsets = [0, 256], sizes = [1, 64], strides = [1, 1]} : vector<2x1024xf32> to vector<1x64xf32>
    %c5 = arith.constant 5 : index
    %c0_11 = arith.constant 0 : index
    %15 = vector.load %arg7[%c5, %c0_11] : memref<36x64xf32, #tpu.memory_space<vmem>>, vector<1x64xf32>
    tpu.vector_store %arg7[%c5, %c0_11], %14 {strides = array<i32>} : memref<36x64xf32, #tpu.memory_space<vmem>>, vector<1x64xf32>,
    %16 = vector.extract_strided_slice %3 {offsets = [0, 320], sizes = [1, 64], strides = [1, 1]} : vector<2x1024xf32> to vector<1x64xf32>
    %c6 = arith.constant 6 : index
    %c0_12 = arith.constant 0 : index
    %17 = vector.load %arg7[%c6, %c0_12] : memref<36x64xf32, #tpu.memory_space<vmem>>, vector<1x64xf32>
    tpu.vector_store %arg7[%c6, %c0_12], %16 {strides = array<i32>} : memref<36x64xf32, #tpu.memory_space<vmem>>, vector<1x64xf32>,
    %18 = vector.extract_strided_slice %3 {offsets = [0, 384], sizes = [1, 64], strides = [1, 1]} : vector<2x1024xf32> to vector<1x64xf32>
    %c7 = arith.constant 7 : index
    %c0_13 = arith.constant 0 : index
    %19 = vector.load %arg7[%c7, %c0_13] : memref<36x64xf32, #tpu.memory_space<vmem>>, vector<1x64xf32>
    tpu.vector_store %arg7[%c7, %c0_13], %18 {strides = array<i32>} : memref<36x64xf32, #tpu.memory_space<vmem>>, vector<1x64xf32>,
    %20 = vector.extract_strided_slice %3 {offsets = [0, 448], sizes = [1, 64], strides = [1, 1]} : vector<2x1024xf32> to vector<1x64xf32>
    %c8 = arith.constant 8 : index
    %c0_14 = arith.constant 0 : index
    %21 = vector.load %arg7[%c8, %c0_14] : memref<36x64xf32, #tpu.memory_space<vmem>>, vector<1x64xf32>
    tpu.vector_store %arg7[%c8, %c0_14], %20 {strides = array<i32>} : memref<36x64xf32, #tpu.memory_space<vmem>>, vector<1x64xf32>,
    %22 = vector.extract_strided_slice %3 {offsets = [0, 512], sizes = [1, 64], strides = [1, 1]} : vector<2x1024xf32> to vector<1x64xf32>
    %c9 = arith.constant 9 : index
    %c0_15 = arith.constant 0 : index
    %23 = vector.load %arg7[%c9, %c0_15] : memref<36x64xf32, #tpu.memory_space<vmem>>, vector<1x64xf32>
    tpu.vector_store %arg7[%c9, %c0_15], %22 {strides = array<i32>} : memref<36x64xf32, #tpu.memory_space<vmem>>, vector<1x64xf32>,
    %24 = vector.extract_strided_slice %3 {offsets = [0, 576], sizes = [1, 64], strides = [1, 1]} : vector<2x1024xf32> to vector<1x64xf32>
    %c10 = arith.constant 10 : index
    %c0_16 = arith.constant 0 : index
    %25 = vector.load %arg7[%c10, %c0_16] : memref<36x64xf32, #tpu.memory_space<vmem>>, vector<1x64xf32>
    tpu.vector_store %arg7[%c10, %c0_16], %24 {strides = array<i32>} : memref<36x64xf32, #tpu.memory_space<vmem>>, vector<1x64xf32>,
    %26 = vector.extract_strided_slice %3 {offsets = [0, 640], sizes = [1, 64], strides = [1, 1]} : vector<2x1024xf32> to vector<1x64xf32>
    %c11 = arith.constant 11 : index
    %c0_17 = arith.constant 0 : index
    %27 = vector.load %arg7[%c11, %c0_17] : memref<36x64xf32, #tpu.memory_space<vmem>>, vector<1x64xf32>
    tpu.vector_store %arg7[%c11, %c0_17], %26 {strides = array<i32>} : memref<36x64xf32, #tpu.memory_space<vmem>>, vector<1x64xf32>,
    %28 = vector.extract_strided_slice %3 {offsets = [0, 704], sizes = [1, 64], strides = [1, 1]} : vector<2x1024xf32> to vector<1x64xf32>
    %c12 = arith.constant 12 : index
    %c0_18 = arith.constant 0 : index
    %29 = vector.load %arg7[%c12, %c0_18] : memref<36x64xf32, #tpu.memory_space<vmem>>, vector<1x64xf32>
    tpu.vector_store %arg7[%c12, %c0_18], %28 {strides = array<i32>} : memref<36x64xf32, #tpu.memory_space<vmem>>, vector<1x64xf32>,
    %30 = vector.extract_strided_slice %3 {offsets = [0, 768], sizes = [1, 64], strides = [1, 1]} : vector<2x1024xf32> to vector<1x64xf32>
    %c13 = arith.constant 13 : index
    %c0_19 = arith.constant 0 : index
    %31 = vector.load %arg7[%c13, %c0_19] : memref<36x64xf32, #tpu.memory_space<vmem>>, vector<1x64xf32>
    tpu.vector_store %arg7[%c13, %c0_19], %30 {strides = array<i32>} : memref<36x64xf32, #tpu.memory_space<vmem>>, vector<1x64xf32>,
    %32 = vector.extract_strided_slice %3 {offsets = [0, 832], sizes = [1, 64], strides = [1, 1]} : vector<2x1024xf32> to vector<1x64xf32>
    %c14 = arith.constant 14 : index
    %c0_20 = arith.constant 0 : index
    %33 = vector.load %arg7[%c14, %c0_20] : memref<36x64xf32, #tpu.memory_space<vmem>>, vector<1x64xf32>
    tpu.vector_store %arg7[%c14, %c0_20], %32 {strides = array<i32>} : memref<36x64xf32, #tpu.memory_space<vmem>>, vector<1x64xf32>,
    %34 = vector.extract_strided_slice %3 {offsets = [0, 896], sizes = [1, 64], strides = [1, 1]} : vector<2x1024xf32> to vector<1x64xf32>
    %c15 = arith.constant 15 : index
    %c0_21 = arith.constant 0 : index
    %35 = vector.load %arg7[%c15, %c0_21] : memref<36x64xf32, #tpu.memory_space<vmem>>, vector<1x64xf32>
    tpu.vector_store %arg7[%c15, %c0_21], %34 {strides = array<i32>} : memref<36x64xf32, #tpu.memory_space<vmem>>, vector<1x64xf32>,
    %36 = vector.extract_strided_slice %3 {offsets = [0, 960], sizes = [1, 64], strides = [1, 1]} : vector<2x1024xf32> to vector<1x64xf32>
    %c16 = arith.constant 16 : index
    %c0_22 = arith.constant 0 : index
    %37 = vector.load %arg7[%c16, %c0_22] : memref<36x64xf32, #tpu.memory_space<vmem>>, vector<1x64xf32>
    tpu.vector_store %arg7[%c16, %c0_22], %36 {strides = array<i32>} : memref<36x64xf32, #tpu.memory_space<vmem>>, vector<1x64xf32>,
    %c18 = arith.constant 18 : index
    %c0_23 = arith.constant 0 : index
    %38 = vector.load %arg7[%c18, %c0_23] : memref<36x64xf32, #tpu.memory_space<vmem>>, vector<1x64xf32>
    tpu.vector_store %arg7[%c18, %c0_23], %0 {strides = array<i32>} : memref<36x64xf32, #tpu.memory_space<vmem>>, vector<1x64xf32>,
    %c35 = arith.constant 35 : index
    %c0_24 = arith.constant 0 : index
    %39 = vector.load %arg7[%c35, %c0_24] : memref<36x64xf32, #tpu.memory_space<vmem>>, vector<1x64xf32>
    tpu.vector_store %arg7[%c35, %c0_24], %0 {strides = array<i32>} : memref<36x64xf32, #tpu.memory_space<vmem>>, vector<1x64xf32>,
    %40 = vector.extract_strided_slice %3 {offsets = [1, 0], sizes = [1, 64], strides = [1, 1]} : vector<2x1024xf32> to vector<1x64xf32>
    %c19 = arith.constant 19 : index
    %c0_25 = arith.constant 0 : index
    %41 = vector.load %arg7[%c19, %c0_25] : memref<36x64xf32, #tpu.memory_space<vmem>>, vector<1x64xf32>
    tpu.vector_store %arg7[%c19, %c0_25], %40 {strides = array<i32>} : memref<36x64xf32, #tpu.memory_space<vmem>>, vector<1x64xf32>,
    %42 = vector.extract_strided_slice %3 {offsets = [1, 64], sizes = [1, 64], strides = [1, 1]} : vector<2x1024xf32> to vector<1x64xf32>
    %c20 = arith.constant 20 : index
    %c0_26 = arith.constant 0 : index
    %43 = vector.load %arg7[%c20, %c0_26] : memref<36x64xf32, #tpu.memory_space<vmem>>, vector<1x64xf32>
    tpu.vector_store %arg7[%c20, %c0_26], %42 {strides = array<i32>} : memref<36x64xf32, #tpu.memory_space<vmem>>, vector<1x64xf32>,
    %44 = vector.extract_strided_slice %3 {offsets = [1, 128], sizes = [1, 64], strides = [1, 1]} : vector<2x1024xf32> to vector<1x64xf32>
    %c21 = arith.constant 21 : index
    %c0_27 = arith.constant 0 : index
    %45 = vector.load %arg7[%c21, %c0_27] : memref<36x64xf32, #tpu.memory_space<vmem>>, vector<1x64xf32>
    tpu.vector_store %arg7[%c21, %c0_27], %44 {strides = array<i32>} : memref<36x64xf32, #tpu.memory_space<vmem>>, vector<1x64xf32>,
    %46 = vector.extract_strided_slice %3 {offsets = [1, 192], sizes = [1, 64], strides = [1, 1]} : vector<2x1024xf32> to vector<1x64xf32>
    %c22 = arith.constant 22 : index
    %c0_28 = arith.constant 0 : index
    %47 = vector.load %arg7[%c22, %c0_28] : memref<36x64xf32, #tpu.memory_space<vmem>>, vector<1x64xf32>
    tpu.vector_store %arg7[%c22, %c0_28], %46 {strides = array<i32>} : memref<36x64xf32, #tpu.memory_space<vmem>>, vector<1x64xf32>,
    %48 = vector.extract_strided_slice %3 {offsets = [1, 256], sizes = [1, 64], strides = [1, 1]} : vector<2x1024xf32> to vector<1x64xf32>
    %c23 = arith.constant 23 : index
    %c0_29 = arith.constant 0 : index
    %49 = vector.load %arg7[%c23, %c0_29] : memref<36x64xf32, #tpu.memory_space<vmem>>, vector<1x64xf32>
    tpu.vector_store %arg7[%c23, %c0_29], %48 {strides = array<i32>} : memref<36x64xf32, #tpu.memory_space<vmem>>, vector<1x64xf32>,
    %50 = vector.extract_strided_slice %3 {offsets = [1, 320], sizes = [1, 64], strides = [1, 1]} : vector<2x1024xf32> to vector<1x64xf32>
    %c24 = arith.constant 24 : index
    %c0_30 = arith.constant 0 : index
    %51 = vector.load %arg7[%c24, %c0_30] : memref<36x64xf32, #tpu.memory_space<vmem>>, vector<1x64xf32>
    tpu.vector_store %arg7[%c24, %c0_30], %50 {strides = array<i32>} : memref<36x64xf32, #tpu.memory_space<vmem>>, vector<1x64xf32>,
    %52 = vector.extract_strided_slice %3 {offsets = [1, 384], sizes = [1, 64], strides = [1, 1]} : vector<2x1024xf32> to vector<1x64xf32>
    %c25 = arith.constant 25 : index
    %c0_31 = arith.constant 0 : index
    %53 = vector.load %arg7[%c25, %c0_31] : memref<36x64xf32, #tpu.memory_space<vmem>>, vector<1x64xf32>
    tpu.vector_store %arg7[%c25, %c0_31], %52 {strides = array<i32>} : memref<36x64xf32, #tpu.memory_space<vmem>>, vector<1x64xf32>,
    %54 = vector.extract_strided_slice %3 {offsets = [1, 448], sizes = [1, 64], strides = [1, 1]} : vector<2x1024xf32> to vector<1x64xf32>
    %c26 = arith.constant 26 : index
    %c0_32 = arith.constant 0 : index
    %55 = vector.load %arg7[%c26, %c0_32] : memref<36x64xf32, #tpu.memory_space<vmem>>, vector<1x64xf32>
    tpu.vector_store %arg7[%c26, %c0_32], %54 {strides = array<i32>} : memref<36x64xf32, #tpu.memory_space<vmem>>, vector<1x64xf32>,
    %56 = vector.extract_strided_slice %3 {offsets = [1, 512], sizes = [1, 64], strides = [1, 1]} : vector<2x1024xf32> to vector<1x64xf32>
    %c27 = arith.constant 27 : index
    %c0_33 = arith.constant 0 : index
    %57 = vector.load %arg7[%c27, %c0_33] : memref<36x64xf32, #tpu.memory_space<vmem>>, vector<1x64xf32>
    tpu.vector_store %arg7[%c27, %c0_33], %56 {strides = array<i32>} : memref<36x64xf32, #tpu.memory_space<vmem>>, vector<1x64xf32>,
    %58 = vector.extract_strided_slice %3 {offsets = [1, 576], sizes = [1, 64], strides = [1, 1]} : vector<2x1024xf32> to vector<1x64xf32>
    %c28 = arith.constant 28 : index
    %c0_34 = arith.constant 0 : index
    %59 = vector.load %arg7[%c28, %c0_34] : memref<36x64xf32, #tpu.memory_space<vmem>>, vector<1x64xf32>
    tpu.vector_store %arg7[%c28, %c0_34], %58 {strides = array<i32>} : memref<36x64xf32, #tpu.memory_space<vmem>>, vector<1x64xf32>,
    %60 = vector.extract_strided_slice %3 {offsets = [1, 640], sizes = [1, 64], strides = [1, 1]} : vector<2x1024xf32> to vector<1x64xf32>
    %c29 = arith.constant 29 : index
    %c0_35 = arith.constant 0 : index
    %61 = vector.load %arg7[%c29, %c0_35] : memref<36x64xf32, #tpu.memory_space<vmem>>, vector<1x64xf32>
    tpu.vector_store %arg7[%c29, %c0_35], %60 {strides = array<i32>} : memref<36x64xf32, #tpu.memory_space<vmem>>, vector<1x64xf32>,
    %62 = vector.extract_strided_slice %3 {offsets = [1, 704], sizes = [1, 64], strides = [1, 1]} : vector<2x1024xf32> to vector<1x64xf32>
    %c30 = arith.constant 30 : index
    %c0_36 = arith.constant 0 : index
    %63 = vector.load %arg7[%c30, %c0_36] : memref<36x64xf32, #tpu.memory_space<vmem>>, vector<1x64xf32>
    tpu.vector_store %arg7[%c30, %c0_36], %62 {strides = array<i32>} : memref<36x64xf32, #tpu.memory_space<vmem>>, vector<1x64xf32>,
    %64 = vector.extract_strided_slice %3 {offsets = [1, 768], sizes = [1, 64], strides = [1, 1]} : vector<2x1024xf32> to vector<1x64xf32>
    %c31 = arith.constant 31 : index
    %c0_37 = arith.constant 0 : index
    %65 = vector.load %arg7[%c31, %c0_37] : memref<36x64xf32, #tpu.memory_space<vmem>>, vector<1x64xf32>
    tpu.vector_store %arg7[%c31, %c0_37], %64 {strides = array<i32>} : memref<36x64xf32, #tpu.memory_space<vmem>>, vector<1x64xf32>,
    %66 = vector.extract_strided_slice %3 {offsets = [1, 832], sizes = [1, 64], strides = [1, 1]} : vector<2x1024xf32> to vector<1x64xf32>
    %c32 = arith.constant 32 : index
    %c0_38 = arith.constant 0 : index
    %67 = vector.load %arg7[%c32, %c0_38] : memref<36x64xf32, #tpu.memory_space<vmem>>, vector<1x64xf32>
    tpu.vector_store %arg7[%c32, %c0_38], %66 {strides = array<i32>} : memref<36x64xf32, #tpu.memory_space<vmem>>, vector<1x64xf32>,
    %68 = vector.extract_strided_slice %3 {offsets = [1, 896], sizes = [1, 64], strides = [1, 1]} : vector<2x1024xf32> to vector<1x64xf32>
    %c33 = arith.constant 33 : index
    %c0_39 = arith.constant 0 : index
    %69 = vector.load %arg7[%c33, %c0_39] : memref<36x64xf32, #tpu.memory_space<vmem>>, vector<1x64xf32>
    tpu.vector_store %arg7[%c33, %c0_39], %68 {strides = array<i32>} : memref<36x64xf32, #tpu.memory_space<vmem>>, vector<1x64xf32>,
    %70 = vector.extract_strided_slice %3 {offsets = [1, 960], sizes = [1, 64], strides = [1, 1]} : vector<2x1024xf32> to vector<1x64xf32>
    %c34 = arith.constant 34 : index
    %c0_40 = arith.constant 0 : index
    %71 = vector.load %arg7[%c34, %c0_40] : memref<36x64xf32, #tpu.memory_space<vmem>>, vector<1x64xf32>
    tpu.vector_store %arg7[%c34, %c0_40], %70 {strides = array<i32>} : memref<36x64xf32, #tpu.memory_space<vmem>>, vector<1x64xf32>,
    %c0_41 = arith.constant 0 : index
    %c0_42 = arith.constant 0 : index
    %72 = vector.load %arg7[%c0_41, %c0_42] : memref<36x64xf32, #tpu.memory_space<vmem>>, vector<18x64xf32>
    %73 = vector.extract_strided_slice %72 {offsets = [0, 0], sizes = [8, 64], strides = [1, 1]} : vector<18x64xf32> to vector<8x64xf32>
    %74 = vector.extract_strided_slice %72 {offsets = [1, 0], sizes = [8, 64], strides = [1, 1]} : vector<18x64xf32> to vector<8x64xf32>
    %75 = vector.extract_strided_slice %72 {offsets = [9, 0], sizes = [8, 64], strides = [1, 1]} : vector<18x64xf32> to vector<8x64xf32>
    %76 = vector.extract_strided_slice %72 {offsets = [10, 0], sizes = [8, 64], strides = [1, 1]} : vector<18x64xf32> to vector<8x64xf32>
    %77 = tpu.concatenate %73, %75, %74 in 1 : vector<8x64xf32>, vector<8x64xf32>, vector<8x64xf32> -> vector<8x192xf32>
    %78 = tpu.concatenate %75, %74, %76 in 1 : vector<8x64xf32>, vector<8x64xf32>, vector<8x64xf32> -> vector<8x192xf32>
    %c18_43 = arith.constant 18 : index
    %c0_44 = arith.constant 0 : index
    %79 = vector.load %arg7[%c18_43, %c0_44] : memref<36x64xf32, #tpu.memory_space<vmem>>, vector<18x64xf32>
    %80 = vector.extract_strided_slice %79 {offsets = [0, 0], sizes = [8, 64], strides = [1, 1]} : vector<18x64xf32> to vector<8x64xf32>
    %81 = vector.extract_strided_slice %79 {offsets = [1, 0], sizes = [8, 64], strides = [1, 1]} : vector<18x64xf32> to vector<8x64xf32>
    %82 = vector.extract_strided_slice %79 {offsets = [9, 0], sizes = [8, 64], strides = [1, 1]} : vector<18x64xf32> to vector<8x64xf32>
    %83 = vector.extract_strided_slice %79 {offsets = [10, 0], sizes = [8, 64], strides = [1, 1]} : vector<18x64xf32> to vector<8x64xf32>
    %84 = tpu.concatenate %80, %82, %81 in 1 : vector<8x64xf32>, vector<8x64xf32>, vector<8x64xf32> -> vector<8x192xf32>
    %85 = tpu.concatenate %82, %81, %83 in 1 : vector<8x64xf32>, vector<8x64xf32>, vector<8x64xf32> -> vector<8x192xf32>
    %86 = tpu.concatenate %77, %84 in 0 : vector<8x192xf32>, vector<8x192xf32> -> vector<16x192xf32>
    %c0_45 = arith.constant 0 : index
    %c0_46 = arith.constant 0 : index
    %87 = vector.load %arg3[%c0_45, %c0_46] : memref<192x128xf32, #tpu.memory_space<vmem>>, vector<192x128xf32>
    %cst_47 = arith.constant dense<0.000000e+00> : vector<16x128xf32>
    %88 = tpu.matmul %86, %87, %cst_47 {dimension_numbers = #tpu.dot_dimension_numbers<[1], [0], [0], [1], [0, 0, 1, 1], [], []>} : vector<16x192xf32>, vector<192x128xf32>, vector<16x128xf32> -> vector<16x128xf32>
    %89 = tpu.concatenate %78, %85 in 0 : vector<8x192xf32>, vector<8x192xf32> -> vector<16x192xf32>
    %c0_48 = arith.constant 0 : index
    %c0_49 = arith.constant 0 : index
    %90 = vector.load %arg3[%c0_48, %c0_49] : memref<192x128xf32, #tpu.memory_space<vmem>>, vector<192x128xf32>
    %cst_50 = arith.constant dense<0.000000e+00> : vector<16x128xf32>
    %91 = tpu.matmul %89, %90, %cst_50 {dimension_numbers = #tpu.dot_dimension_numbers<[1], [0], [0], [1], [0, 0, 1, 1], [], []>} : vector<16x192xf32>, vector<192x128xf32>, vector<16x128xf32> -> vector<16x128xf32>
    %92 = arith.maximumf %88, %91 : vector<16x128xf32>
    %93 = vector.extract_strided_slice %92 {offsets = [0, 0], sizes = [16, 64], strides = [1, 1]} : vector<16x128xf32> to vector<16x64xf32>
    %94 = vector.extract_strided_slice %92 {offsets = [0, 64], sizes = [16, 64], strides = [1, 1]} : vector<16x128xf32> to vector<16x64xf32>
    %95 = arith.maximumf %93, %94 : vector<16x64xf32>
    %cst_51 = arith.constant 0.000000e+00 : f32
    %96 = vector.broadcast %cst_51 : f32 to vector<16x64xf32>
    %97 = arith.maximumf %95, %96 : vector<16x64xf32>
    %c0_52 = arith.constant 0 : index
    %c0_53 = arith.constant 0 : index
    %98 = vector.load %arg8[%c0_52, %c0_53] : memref<20x64xf32, #tpu.memory_space<vmem>>, vector<1x64xf32>
    tpu.vector_store %arg8[%c0_52, %c0_53], %0 {strides = array<i32>} : memref<20x64xf32, #tpu.memory_space<vmem>>, vector<1x64xf32>,
    %c9_54 = arith.constant 9 : index
    %c0_55 = arith.constant 0 : index
    %99 = vector.load %arg8[%c9_54, %c0_55] : memref<20x64xf32, #tpu.memory_space<vmem>>, vector<1x64xf32>
    tpu.vector_store %arg8[%c9_54, %c0_55], %0 {strides = array<i32>} : memref<20x64xf32, #tpu.memory_space<vmem>>, vector<1x64xf32>,
    %100 = vector.extract_strided_slice %97 {offsets = [0, 0], sizes = [8, 64], strides = [1, 1]} : vector<16x64xf32> to vector<8x64xf32>
    %c1_56 = arith.constant 1 : index
    %c0_57 = arith.constant 0 : index
    %101 = vector.load %arg8[%c1_56, %c0_57] : memref<20x64xf32, #tpu.memory_space<vmem>>, vector<8x64xf32>
    tpu.vector_store %arg8[%c1_56, %c0_57], %100 {strides = array<i32>} : memref<20x64xf32, #tpu.memory_space<vmem>>, vector<8x64xf32>,
    %c10_58 = arith.constant 10 : index
    %c0_59 = arith.constant 0 : index
    %102 = vector.load %arg8[%c10_58, %c0_59] : memref<20x64xf32, #tpu.memory_space<vmem>>, vector<1x64xf32>
    tpu.vector_store %arg8[%c10_58, %c0_59], %0 {strides = array<i32>} : memref<20x64xf32, #tpu.memory_space<vmem>>, vector<1x64xf32>,
    %c19_60 = arith.constant 19 : index
    %c0_61 = arith.constant 0 : index
    %103 = vector.load %arg8[%c19_60, %c0_61] : memref<20x64xf32, #tpu.memory_space<vmem>>, vector<1x64xf32>
    tpu.vector_store %arg8[%c19_60, %c0_61], %0 {strides = array<i32>} : memref<20x64xf32, #tpu.memory_space<vmem>>, vector<1x64xf32>,
    %104 = vector.extract_strided_slice %97 {offsets = [8, 0], sizes = [8, 64], strides = [1, 1]} : vector<16x64xf32> to vector<8x64xf32>
    %c11_62 = arith.constant 11 : index
    %c0_63 = arith.constant 0 : index
    %105 = vector.load %arg8[%c11_62, %c0_63] : memref<20x64xf32, #tpu.memory_space<vmem>>, vector<8x64xf32>
    tpu.vector_store %arg8[%c11_62, %c0_63], %104 {strides = array<i32>} : memref<20x64xf32, #tpu.memory_space<vmem>>, vector<8x64xf32>,
    %c0_64 = arith.constant 0 : index
    %c0_65 = arith.constant 0 : index
    %106 = vector.load %arg8[%c0_64, %c0_65] : memref<20x64xf32, #tpu.memory_space<vmem>>, vector<10x64xf32>
    %107 = vector.extract_strided_slice %106 {offsets = [0, 0], sizes = [8, 64], strides = [1, 1]} : vector<10x64xf32> to vector<8x64xf32>
    %108 = vector.extract_strided_slice %106 {offsets = [1, 0], sizes = [8, 64], strides = [1, 1]} : vector<10x64xf32> to vector<8x64xf32>
    %109 = vector.extract_strided_slice %106 {offsets = [2, 0], sizes = [8, 64], strides = [1, 1]} : vector<10x64xf32> to vector<8x64xf32>
    %110 = tpu.concatenate %107, %108, %109 in 1 : vector<8x64xf32>, vector<8x64xf32>, vector<8x64xf32> -> vector<8x192xf32>
    %c10_66 = arith.constant 10 : index
    %c0_67 = arith.constant 0 : index
    %111 = vector.load %arg8[%c10_66, %c0_67] : memref<20x64xf32, #tpu.memory_space<vmem>>, vector<10x64xf32>
    %112 = vector.extract_strided_slice %111 {offsets = [0, 0], sizes = [8, 64], strides = [1, 1]} : vector<10x64xf32> to vector<8x64xf32>
    %113 = vector.extract_strided_slice %111 {offsets = [1, 0], sizes = [8, 64], strides = [1, 1]} : vector<10x64xf32> to vector<8x64xf32>
    %114 = vector.extract_strided_slice %111 {offsets = [2, 0], sizes = [8, 64], strides = [1, 1]} : vector<10x64xf32> to vector<8x64xf32>
    %115 = tpu.concatenate %112, %113, %114 in 1 : vector<8x64xf32>, vector<8x64xf32>, vector<8x64xf32> -> vector<8x192xf32>
    %116 = tpu.concatenate %110, %115 in 0 : vector<8x192xf32>, vector<8x192xf32> -> vector<16x192xf32>
    %c0_68 = arith.constant 0 : index
    %c0_69 = arith.constant 0 : index
    %117 = vector.load %arg4[%c0_68, %c0_69] : memref<192x128xf32, #tpu.memory_space<vmem>>, vector<192x128xf32>
    %cst_70 = arith.constant dense<0.000000e+00> : vector<16x128xf32>
    %118 = tpu.matmul %116, %117, %cst_70 {dimension_numbers = #tpu.dot_dimension_numbers<[1], [0], [0], [1], [0, 0, 1, 1], [], []>} : vector<16x192xf32>, vector<192x128xf32>, vector<16x128xf32> -> vector<16x128xf32>
    %119 = math.tanh %118 : vector<16x128xf32>
    %120 = vector.extract_strided_slice %119 {offsets = [0, 0], sizes = [1, 128], strides = [1, 1]} : vector<16x128xf32> to vector<1x128xf32>
    %c0_71 = arith.constant 0 : index
    %c0_72 = arith.constant 0 : index
    %121 = vector.load %arg9[%c0_71, %c0_72] : memref<2x1024xf32, #tpu.memory_space<vmem>>, vector<1x128xf32>
    tpu.vector_store %arg9[%c0_71, %c0_72], %120 {strides = array<i32>} : memref<2x1024xf32, #tpu.memory_space<vmem>>, vector<1x128xf32>,
    %122 = vector.extract_strided_slice %119 {offsets = [1, 0], sizes = [1, 128], strides = [1, 1]} : vector<16x128xf32> to vector<1x128xf32>
    %c0_73 = arith.constant 0 : index
    %c128 = arith.constant 128 : index
    %123 = vector.load %arg9[%c0_73, %c128] : memref<2x1024xf32, #tpu.memory_space<vmem>>, vector<1x128xf32>
    tpu.vector_store %arg9[%c0_73, %c128], %122 {strides = array<i32>} : memref<2x1024xf32, #tpu.memory_space<vmem>>, vector<1x128xf32>,
    %124 = vector.extract_strided_slice %119 {offsets = [2, 0], sizes = [1, 128], strides = [1, 1]} : vector<16x128xf32> to vector<1x128xf32>
    %c0_74 = arith.constant 0 : index
    %c256 = arith.constant 256 : index
    %125 = vector.load %arg9[%c0_74, %c256] : memref<2x1024xf32, #tpu.memory_space<vmem>>, vector<1x128xf32>
    tpu.vector_store %arg9[%c0_74, %c256], %124 {strides = array<i32>} : memref<2x1024xf32, #tpu.memory_space<vmem>>, vector<1x128xf32>,
    %126 = vector.extract_strided_slice %119 {offsets = [3, 0], sizes = [1, 128], strides = [1, 1]} : vector<16x128xf32> to vector<1x128xf32>
    %c0_75 = arith.constant 0 : index
    %c384 = arith.constant 384 : index
    %127 = vector.load %arg9[%c0_75, %c384] : memref<2x1024xf32, #tpu.memory_space<vmem>>, vector<1x128xf32>
    tpu.vector_store %arg9[%c0_75, %c384], %126 {strides = array<i32>} : memref<2x1024xf32, #tpu.memory_space<vmem>>, vector<1x128xf32>,
    %128 = vector.extract_strided_slice %119 {offsets = [4, 0], sizes = [1, 128], strides = [1, 1]} : vector<16x128xf32> to vector<1x128xf32>
    %c0_76 = arith.constant 0 : index
    %c512 = arith.constant 512 : index
    %129 = vector.load %arg9[%c0_76, %c512] : memref<2x1024xf32, #tpu.memory_space<vmem>>, vector<1x128xf32>
    tpu.vector_store %arg9[%c0_76, %c512], %128 {strides = array<i32>} : memref<2x1024xf32, #tpu.memory_space<vmem>>, vector<1x128xf32>,
    %130 = vector.extract_strided_slice %119 {offsets = [5, 0], sizes = [1, 128], strides = [1, 1]} : vector<16x128xf32> to vector<1x128xf32>
    %c0_77 = arith.constant 0 : index
    %c640 = arith.constant 640 : index
    %131 = vector.load %arg9[%c0_77, %c640] : memref<2x1024xf32, #tpu.memory_space<vmem>>, vector<1x128xf32>
    tpu.vector_store %arg9[%c0_77, %c640], %130 {strides = array<i32>} : memref<2x1024xf32, #tpu.memory_space<vmem>>, vector<1x128xf32>,
    %132 = vector.extract_strided_slice %119 {offsets = [6, 0], sizes = [1, 128], strides = [1, 1]} : vector<16x128xf32> to vector<1x128xf32>
    %c0_78 = arith.constant 0 : index
    %c768 = arith.constant 768 : index
    %133 = vector.load %arg9[%c0_78, %c768] : memref<2x1024xf32, #tpu.memory_space<vmem>>, vector<1x128xf32>
    tpu.vector_store %arg9[%c0_78, %c768], %132 {strides = array<i32>} : memref<2x1024xf32, #tpu.memory_space<vmem>>, vector<1x128xf32>,
    %134 = vector.extract_strided_slice %119 {offsets = [7, 0], sizes = [1, 128], strides = [1, 1]} : vector<16x128xf32> to vector<1x128xf32>
    %c0_79 = arith.constant 0 : index
    %c896 = arith.constant 896 : index
    %135 = vector.load %arg9[%c0_79, %c896] : memref<2x1024xf32, #tpu.memory_space<vmem>>, vector<1x128xf32>
    tpu.vector_store %arg9[%c0_79, %c896], %134 {strides = array<i32>} : memref<2x1024xf32, #tpu.memory_space<vmem>>, vector<1x128xf32>,
    %136 = vector.extract_strided_slice %119 {offsets = [8, 0], sizes = [1, 128], strides = [1, 1]} : vector<16x128xf32> to vector<1x128xf32>
    %c1_80 = arith.constant 1 : index
    %c0_81 = arith.constant 0 : index
    %137 = vector.load %arg9[%c1_80, %c0_81] : memref<2x1024xf32, #tpu.memory_space<vmem>>, vector<1x128xf32>
    tpu.vector_store %arg9[%c1_80, %c0_81], %136 {strides = array<i32>} : memref<2x1024xf32, #tpu.memory_space<vmem>>, vector<1x128xf32>,
    %138 = vector.extract_strided_slice %119 {offsets = [9, 0], sizes = [1, 128], strides = [1, 1]} : vector<16x128xf32> to vector<1x128xf32>
    %c1_82 = arith.constant 1 : index
    %c128_83 = arith.constant 128 : index
    %139 = vector.load %arg9[%c1_82, %c128_83] : memref<2x1024xf32, #tpu.memory_space<vmem>>, vector<1x128xf32>
    tpu.vector_store %arg9[%c1_82, %c128_83], %138 {strides = array<i32>} : memref<2x1024xf32, #tpu.memory_space<vmem>>, vector<1x128xf32>,
    %140 = vector.extract_strided_slice %119 {offsets = [10, 0], sizes = [1, 128], strides = [1, 1]} : vector<16x128xf32> to vector<1x128xf32>
    %c1_84 = arith.constant 1 : index
    %c256_85 = arith.constant 256 : index
    %141 = vector.load %arg9[%c1_84, %c256_85] : memref<2x1024xf32, #tpu.memory_space<vmem>>, vector<1x128xf32>
    tpu.vector_store %arg9[%c1_84, %c256_85], %140 {strides = array<i32>} : memref<2x1024xf32, #tpu.memory_space<vmem>>, vector<1x128xf32>,
    %142 = vector.extract_strided_slice %119 {offsets = [11, 0], sizes = [1, 128], strides = [1, 1]} : vector<16x128xf32> to vector<1x128xf32>
    %c1_86 = arith.constant 1 : index
    %c384_87 = arith.constant 384 : index
    %143 = vector.load %arg9[%c1_86, %c384_87] : memref<2x1024xf32, #tpu.memory_space<vmem>>, vector<1x128xf32>
    tpu.vector_store %arg9[%c1_86, %c384_87], %142 {strides = array<i32>} : memref<2x1024xf32, #tpu.memory_space<vmem>>, vector<1x128xf32>,
    %144 = vector.extract_strided_slice %119 {offsets = [12, 0], sizes = [1, 128], strides = [1, 1]} : vector<16x128xf32> to vector<1x128xf32>
    %c1_88 = arith.constant 1 : index
    %c512_89 = arith.constant 512 : index
    %145 = vector.load %arg9[%c1_88, %c512_89] : memref<2x1024xf32, #tpu.memory_space<vmem>>, vector<1x128xf32>
    tpu.vector_store %arg9[%c1_88, %c512_89], %144 {strides = array<i32>} : memref<2x1024xf32, #tpu.memory_space<vmem>>, vector<1x128xf32>,
    %146 = vector.extract_strided_slice %119 {offsets = [13, 0], sizes = [1, 128], strides = [1, 1]} : vector<16x128xf32> to vector<1x128xf32>
    %c1_90 = arith.constant 1 : index
    %c640_91 = arith.constant 640 : index
    %147 = vector.load %arg9[%c1_90, %c640_91] : memref<2x1024xf32, #tpu.memory_space<vmem>>, vector<1x128xf32>
    tpu.vector_store %arg9[%c1_90, %c640_91], %146 {strides = array<i32>} : memref<2x1024xf32, #tpu.memory_space<vmem>>, vector<1x128xf32>,
    %148 = vector.extract_strided_slice %119 {offsets = [14, 0], sizes = [1, 128], strides = [1, 1]} : vector<16x128xf32> to vector<1x128xf32>
    %c1_92 = arith.constant 1 : index
    %c768_93 = arith.constant 768 : index
    %149 = vector.load %arg9[%c1_92, %c768_93] : memref<2x1024xf32, #tpu.memory_space<vmem>>, vector<1x128xf32>
    tpu.vector_store %arg9[%c1_92, %c768_93], %148 {strides = array<i32>} : memref<2x1024xf32, #tpu.memory_space<vmem>>, vector<1x128xf32>,
    %150 = vector.extract_strided_slice %119 {offsets = [15, 0], sizes = [1, 128], strides = [1, 1]} : vector<16x128xf32> to vector<1x128xf32>
    %c1_94 = arith.constant 1 : index
    %c896_95 = arith.constant 896 : index
    %151 = vector.load %arg9[%c1_94, %c896_95] : memref<2x1024xf32, #tpu.memory_space<vmem>>, vector<1x128xf32>
    tpu.vector_store %arg9[%c1_94, %c896_95], %150 {strides = array<i32>} : memref<2x1024xf32, #tpu.memory_space<vmem>>, vector<1x128xf32>,
    %c0_96 = arith.constant 0 : index
    %c0_97 = arith.constant 0 : index
    %152 = vector.load %arg9[%c0_96, %c0_97] : memref<2x1024xf32, #tpu.memory_space<vmem>>, vector<2x1024xf32>
    %c0_98 = arith.constant 0 : index
    %c0_99 = arith.constant 0 : index
    %153 = vector.load %arg5[%c0_98, %c0_99] : memref<1024x16xf32, #tpu.memory_space<vmem>>, vector<1024x16xf32>
    %cst_100 = arith.constant dense<0.000000e+00> : vector<2x16xf32>
    %154 = tpu.matmul %152, %153, %cst_100 {dimension_numbers = #tpu.dot_dimension_numbers<[1], [0], [0], [1], [0, 0, 1, 1], [], []>} : vector<2x1024xf32>, vector<1024x16xf32>, vector<2x16xf32> -> vector<2x16xf32>
    %c0_101 = arith.constant 0 : index
    %c0_102 = arith.constant 0 : index
    %155 = vector.load %arg6[%c0_101, %c0_102] : memref<2x16xf32, #tpu.memory_space<vmem>>, vector<2x16xf32>
    tpu.vector_store %arg6[%c0_101, %c0_102], %154 {strides = array<i32>} : memref<2x16xf32, #tpu.memory_space<vmem>>, vector<2x16xf32>,
    return
  }
  func.func @transform_0(%arg0: i32) -> (i32, i32) {
    %c0_i32 = arith.constant 0 : i32
    %c0_i32_0 = arith.constant 0 : i32
    return %arg0, %c0_i32 : i32, i32
  }
  func.func @transform_1(%arg0: i32) -> (i32, i32) {
    %c0_i32 = arith.constant 0 : i32
    %c0_i32_0 = arith.constant 0 : i32
    %c0_i32_1 = arith.constant 0 : i32
    return %c0_i32, %c0_i32_0 : i32, i32
  }
  func.func @transform_2(%arg0: i32) -> (i32, i32) {
    %c0_i32 = arith.constant 0 : i32
    %c0_i32_0 = arith.constant 0 : i32
    %c0_i32_1 = arith.constant 0 : i32
    return %c0_i32, %c0_i32_0 : i32, i32
  }
  func.func @transform_3(%arg0: i32) -> (i32, i32) {
    %c0_i32 = arith.constant 0 : i32
    %c0_i32_0 = arith.constant 0 : i32
    %c0_i32_1 = arith.constant 0 : i32
    return %c0_i32, %c0_i32_0 : i32, i32
  }
  func.func @transform_4(%arg0: i32) -> (i32, i32) {
    %c0_i32 = arith.constant 0 : i32
    %c0_i32_0 = arith.constant 0 : i32
    %c0_i32_1 = arith.constant 0 : i32
    return %c0_i32, %c0_i32_0 : i32, i32
  }
  func.func @transform_5(%arg0: i32) -> (i32, i32) {
    %c0_i32 = arith.constant 0 : i32
    %c0_i32_0 = arith.constant 0 : i32
    return %arg0, %c0_i32 : i32, i32
  }
}

</mosaic_0001>

<llo_original>
// kernel: network_forward.1
$region0: #{network_forward.1}
  #allocation0 [shape = 'u32[]', space=smem, size = 0x4, offset = 0x4, fixed_abs, tag = 'smem constant byte address 0x4 - core index']
  #allocation1 [shape = 'u32[144,128]{1,0:T(1,128)}', space=vmem, size = 0x12000, scoped, tag = 'internal scratch']
  #allocation2 [shape = 'f32[36,64]{1,0:T(8,128)}', space=vmem, size = 0x5000, scoped, tag = 'scratch operand']
  #allocation3 [shape = 'f32[20,64]{1,0:T(8,128)}', space=vmem, size = 0x3000, scoped, tag = 'scratch operand']
  #allocation4 [shape = 'f32[2,1024]{1,0:T(2,128)}', space=vmem, size = 0x2000, scoped, tag = 'scratch operand']
  %s0 = inlined_call_operand.hbm [shape: f32[2,64], index: 0, kind: input, shape index: {}]
  %s1 = inlined_call_operand.hbm [shape: f32[64,1024], index: 1, kind: input, shape index: {}]
  %s2 = inlined_call_operand.hbm [shape: f32[192,128], index: 2, kind: input, shape index: {}]
  %s3 = inlined_call_operand.hbm [shape: f32[192,128], index: 3, kind: input, shape index: {}]
  %s4 = inlined_call_operand.hbm [shape: f32[1024,16], index: 4, kind: input, shape index: {}]
  %s5 = inlined_call_operand.hbm [shape: f32[2,16], index: 5, kind: output, shape index: {}]
  %s6 = sld [smem:[#allocation0]]
  $region50: #{network_forward.1} parent=0
    _
  %s8 = ssub.s32 1, %s6
  %s9 = scalar_select 0, %s8, %s6
  $region1: #{network_forward.1} parent=0
    #allocation5 [shape = 'u8[1024]{0}', space=vmem, size = 0x400, scoped, tag = 'input window, operand 0, single buffered']
    #allocation6 [shape = 's32[1]{0}', space=sflag, size = 0x4, scoped, tag = 'scoped memory for network_forward.1']
    #allocation7 [shape = 's32[1]{0}', space=sflag, size = 0x4, scoped, tag = 'scoped memory for network_forward.1']
    #allocation8 [shape = 'u8[262144]{0}', space=vmem, size = 0x40000, scoped, tag = 'input window, operand 1, single buffered']
    #allocation9 [shape = 's32[1]{0}', space=sflag, size = 0x4, scoped, tag = 'scoped memory for network_forward.1']
    #allocation10 [shape = 'u8[98304]{0}', space=vmem, size = 0x18000, scoped, tag = 'input window, operand 2, single buffered']
    #allocation11 [shape = 'u8[98304]{0}', space=vmem, size = 0x18000, scoped, tag = 'input window, operand 3, single buffered']
    #allocation12 [shape = 's32[1]{0}', space=sflag, size = 0x4, scoped, tag = 'scoped memory for network_forward.1']
    #allocation13 [shape = 'u8[524288]{0}', space=vmem, size = 0x80000, scoped, tag = 'input window, operand 4, single buffered']
    #allocation14 [shape = 'u8[1024]{0}', space=vmem, size = 0x400, scoped, tag = 'output window, operand 0, single buffered']
    %10 = vsyncpa [#allocation6], 0
    %11 = vsyncpa [#allocation9], 0
    %12 = vsyncpa [#allocation12], 0
    %13 = vsyncpa [#allocation7], 0
    // Predicated region
    $region2: #{network_forward.1} parent=1 // pred_check
      _
    $region3: #{network_forward.1} parent=1 // pred_check_branch
      %15 = sbr.rel (0) target = $region5
    $region4: #{network_forward.1} parent=1 // pred_region
      %s17 = ssub.s32 32, 32
      %18 = vsyncadd [#allocation6], %s17
      %s20 = sshll.u32 [#allocation5], 4
      %s21 = int_to_ptr.vmem [resolvable:$true] %s20
      %23 = dma.hbm_to_vmem [thread:$0]  %s0, 32, %s21, [#allocation6]
    $region5: #{network_forward.1} parent=1 // pred_fallthru
      _
    // Predicated region
    $region6: #{network_forward.1} parent=1 // pred_check
      _
    $region7: #{network_forward.1} parent=1 // pred_check_branch
      %25 = sbr.rel (0) target = $region9
    $region8: #{network_forward.1} parent=1 // pred_region
      %s27 = ssub.s32 8192, 8192
      %28 = vsyncadd [#allocation9], %s27
      %s29 = sshll.u32 [#allocation8], 4
      %s30 = int_to_ptr.vmem [resolvable:$true] %s29
      %35 = dma.hbm_to_vmem [thread:$0]  %s1, 8192, %s30, [#allocation9], 1024, 1024, 64
    $region9: #{network_forward.1} parent=1 // pred_fallthru
      _
    // Predicated region
    $region10: #{network_forward.1} parent=1 // pred_check
      _
    $region11: #{network_forward.1} parent=1 // pred_check_branch
      %37 = sbr.rel (0) target = $region13
    $region12: #{network_forward.1} parent=1 // pred_region
      %s39 = ssub.s32 3072, 3072
      %40 = vsyncadd [#allocation9], %s39
      %s41 = sshll.u32 [#allocation10], 4
      %s42 = int_to_ptr.vmem [resolvable:$true] %s41
      %47 = dma.hbm_to_vmem [thread:$0]  %s2, 3072, %s42, [#allocation9], 128, 128, 8
    $region13: #{network_forward.1} parent=1 // pred_fallthru
      _
    // Predicated region
    $region14: #{network_forward.1} parent=1 // pred_check
      _
    $region15: #{network_forward.1} parent=1 // pred_check_branch
      %49 = sbr.rel (0) target = $region17
    $region16: #{network_forward.1} parent=1 // pred_region
      %s51 = ssub.s32 3072, 3072
      %52 = vsyncadd [#allocation12], %s51
      %s53 = sshll.u32 [#allocation11], 4
      %s54 = int_to_ptr.vmem [resolvable:$true] %s53
      %59 = dma.hbm_to_vmem [thread:$0]  %s3, 3072, %s54, [#allocation12], 128, 128, 8
    $region17: #{network_forward.1} parent=1 // pred_fallthru
      _
    // Predicated region
    $region18: #{network_forward.1} parent=1 // pred_check
      _
    $region19: #{network_forward.1} parent=1 // pred_check_branch
      %61 = sbr.rel (0) target = $region21
    $region20: #{network_forward.1} parent=1 // pred_region
      %s63 = ssub.s32 16384, 16384
      %64 = vsyncadd [#allocation12], %s63
      %s65 = sshll.u32 [#allocation13], 4
      %s66 = int_to_ptr.vmem [resolvable:$true] %s65
      %71 = dma.hbm_to_vmem [thread:$0]  %s4, 16384, %s66, [#allocation12], 128, 128, 8
    $region21: #{network_forward.1} parent=1 // pred_fallthru
      _
    // Predicated region
    $region22: #{network_forward.1} parent=1 // pred_check
      _
    $region23: #{network_forward.1} parent=1 // pred_check_branch
      %73 = sbr.rel (0) target = $region25
    $region24: #{network_forward.1} parent=1 // pred_region
      %74 = dma.done [#allocation6], 32
    $region25: #{network_forward.1} parent=1 // pred_fallthru
      _
    // Predicated region
    $region26: #{network_forward.1} parent=1 // pred_check
      _
    $region27: #{network_forward.1} parent=1 // pred_check_branch
      %76 = sbr.rel (0) target = $region29
    $region28: #{network_forward.1} parent=1 // pred_region
      %77 = dma.done [#allocation9], 8192
    $region29: #{network_forward.1} parent=1 // pred_fallthru
      _
    // Predicated region
    $region30: #{network_forward.1} parent=1 // pred_check
      _
    $region31: #{network_forward.1} parent=1 // pred_check_branch
      %79 = sbr.rel (0) target = $region33
    $region32: #{network_forward.1} parent=1 // pred_region
      %80 = dma.done [#allocation9], 3072
    $region33: #{network_forward.1} parent=1 // pred_fallthru
      _
    // Predicated region
    $region34: #{network_forward.1} parent=1 // pred_check
      _
    $region35: #{network_forward.1} parent=1 // pred_check_branch
      %82 = sbr.rel (0) target = $region37
    $region36: #{network_forward.1} parent=1 // pred_region
      %83 = dma.done [#allocation12], 3072
    $region37: #{network_forward.1} parent=1 // pred_fallthru
      _
    // Predicated region
    $region38: #{network_forward.1} parent=1 // pred_check
      _
    $region39: #{network_forward.1} parent=1 // pred_check_branch
      %85 = sbr.rel (0) target = $region41
    $region40: #{network_forward.1} parent=1 // pred_region
      %86 = dma.done [#allocation12], 16384
    $region41: #{network_forward.1} parent=1 // pred_fallthru
      _
    %v87 = vld [vmem:[#allocation5] sm:$0x3]
    %v88 = vld [vmem:[#allocation8] sm:$0xff]
    %v89 = vld [vmem:[#allocation8 + $0x8] sm:$0xff]
    %v90 = vld [vmem:[#allocation8 + $0x10] sm:$0xff]
    %v91 = vld [vmem:[#allocation8 + $0x18] sm:$0xff]
    %v92 = vld [vmem:[#allocation8 + $0x20] sm:$0xff]
    %v93 = vld [vmem:[#allocation8 + $0x28] sm:$0xff]
    %v94 = vld [vmem:[#allocation8 + $0x30] sm:$0xff]
    %v95 = vld [vmem:[#allocation8 + $0x38] sm:$0xff]
    %v96 = vld [vmem:[#allocation8 + $0x40] sm:$0xff]
    %v97 = vld [vmem:[#allocation8 + $0x48] sm:$0xff]
    %v98 = vld [vmem:[#allocation8 + $0x50] sm:$0xff]
    %v99 = vld [vmem:[#allocation8 + $0x58] sm:$0xff]
    %v100 = vld [vmem:[#allocation8 + $0x60] sm:$0xff]
    %v101 = vld [vmem:[#allocation8 + $0x68] sm:$0xff]
    %v102 = vld [vmem:[#allocation8 + $0x70] sm:$0xff]
    %v103 = vld [vmem:[#allocation8 + $0x78] sm:$0xff]
    %v104 = vld [vmem:[#allocation8 + $0x80] sm:$0xff]
    %v105 = vld [vmem:[#allocation8 + $0x88] sm:$0xff]
    %v106 = vld [vmem:[#allocation8 + $0x90] sm:$0xff]
    %v107 = vld [vmem:[#allocation8 + $0x98] sm:$0xff]
    %v108 = vld [vmem:[#allocation8 + $0xa0] sm:$0xff]
    %v109 = vld [vmem:[#allocation8 + $0xa8] sm:$0xff]
    %v110 = vld [vmem:[#allocation8 + $0xb0] sm:$0xff]
    %v111 = vld [vmem:[#allocation8 + $0xb8] sm:$0xff]
    %v112 = vld [vmem:[#allocation8 + $0xc0] sm:$0xff]
    %v113 = vld [vmem:[#allocation8 + $0xc8] sm:$0xff]
    %v114 = vld [vmem:[#allocation8 + $0xd0] sm:$0xff]
    %v115 = vld [vmem:[#allocation8 + $0xd8] sm:$0xff]
    %v116 = vld [vmem:[#allocation8 + $0xe0] sm:$0xff]
    %v117 = vld [vmem:[#allocation8 + $0xe8] sm:$0xff]
    %v118 = vld [vmem:[#allocation8 + $0xf0] sm:$0xff]
    %v119 = vld [vmem:[#allocation8 + $0xf8] sm:$0xff]
    %v120 = vld [vmem:[#allocation8 + $0x100] sm:$0xff]
    %v121 = vld [vmem:[#allocation8 + $0x108] sm:$0xff]
    %v122 = vld [vmem:[#allocation8 + $0x110] sm:$0xff]
    %v123 = vld [vmem:[#allocation8 + $0x118] sm:$0xff]
    %v124 = vld [vmem:[#allocation8 + $0x120] sm:$0xff]
    %v125 = vld [vmem:[#allocation8 + $0x128] sm:$0xff]
    %v126 = vld [vmem:[#allocation8 + $0x130] sm:$0xff]
    %v127 = vld [vmem:[#allocation8 + $0x138] sm:$0xff]
    %v128 = vld [vmem:[#allocation8 + $0x140] sm:$0xff]
    %v129 = vld [vmem:[#allocation8 + $0x148] sm:$0xff]
    %v130 = vld [vmem:[#allocation8 + $0x150] sm:$0xff]
    %v131 = vld [vmem:[#allocation8 + $0x158] sm:$0xff]
    %v132 = vld [vmem:[#allocation8 + $0x160] sm:$0xff]
    %v133 = vld [vmem:[#allocation8 + $0x168] sm:$0xff]
    %v134 = vld [vmem:[#allocation8 + $0x170] sm:$0xff]
    %v135 = vld [vmem:[#allocation8 + $0x178] sm:$0xff]
    %v136 = vld [vmem:[#allocation8 + $0x180] sm:$0xff]
    %v137 = vld [vmem:[#allocation8 + $0x188] sm:$0xff]
    %v138 = vld [vmem:[#allocation8 + $0x190] sm:$0xff]
    %v139 = vld [vmem:[#allocation8 + $0x198] sm:$0xff]
    %v140 = vld [vmem:[#allocation8 + $0x1a0] sm:$0xff]
    %v141 = vld [vmem:[#allocation8 + $0x1a8] sm:$0xff]
    %v142 = vld [vmem:[#allocation8 + $0x1b0] sm:$0xff]
    %v143 = vld [vmem:[#allocation8 + $0x1b8] sm:$0xff]
    %v144 = vld [vmem:[#allocation8 + $0x1c0] sm:$0xff]
    %v145 = vld [vmem:[#allocation8 + $0x1c8] sm:$0xff]
    %v146 = vld [vmem:[#allocation8 + $0x1d0] sm:$0xff]
    %v147 = vld [vmem:[#allocation8 + $0x1d8] sm:$0xff]
    %v148 = vld [vmem:[#allocation8 + $0x1e0] sm:$0xff]
    %v149 = vld [vmem:[#allocation8 + $0x1e8] sm:$0xff]
    %v150 = vld [vmem:[#allocation8 + $0x1f0] sm:$0xff]
    %v151 = vld [vmem:[#allocation8 + $0x1f8] sm:$0xff]
    %vm152 = vcmask 523264
    %v154 = vsel %vm152, %v87, 0
    %156 = vmatprep.subr.mxu0 %v89
    %157 = vmatpush1.msra.mxu0 %v88
    %158 = vmatprep.subr.mxu0 %v97
    %159 = vmatpush1.msra.mxu0 %v96
    %160 = vmatprep.subr.mxu0 %v105
    %161 = vmatpush1.msra.mxu0 %v104
    %162 = vmatprep.subr.mxu0 %v113
    %163 = vmatpush1.msra.mxu0 %v112
    %164 = vmatprep.subr.mxu0 %v121
    %165 = vmatpush1.msra.mxu0 %v120
    %166 = vmatprep.subr.mxu0 %v129
    %167 = vmatpush1.msra.mxu0 %v128
    %168 = vmatprep.subr.mxu0 %v137
    %169 = vmatpush1.msra.mxu0 %v136
    %170 = vmatprep.subr.mxu0 %v145
    %171 = vmatpush1.msra.mxu0 %v144
    %172 = vmatprep.subr.mxu0 0.0
    %173 = vmatpush1.msra.mxu0 0.0
    %174 = vmatprep.subr.mxu0 0.0
    %175 = vmatpush1.msra.mxu0 0.0
    %176 = vmatprep.subr.mxu0 0.0
    %177 = vmatpush1.msra.mxu0 0.0
    %178 = vmatprep.subr.mxu0 0.0
    %179 = vmatpush1.msra.mxu0 0.0
    %180 = vmatprep.subr.mxu0 0.0
    %181 = vmatpush1.msra.mxu0 0.0
    %182 = vmatprep.subr.mxu0 0.0
    %183 = vmatpush1.msra.mxu0 0.0
    %184 = vmatprep.subr.mxu0 0.0
    %185 = vmatpush1.msra.mxu0 0.0
    %186 = vmatprep.subr.mxu0 0.0
    %187 = vmatpush1.msra.mxu0 0.0
    %188 = vmatprep.subr.mxu0 0.0
    %189 = vmatpush1.msra.mxu0 0.0
    %190 = vmatprep.subr.mxu0 0.0
    %191 = vmatpush1.msra.mxu0 0.0
    %192 = vmatprep.subr.mxu0 0.0
    %193 = vmatpush1.msra.mxu0 0.0
    %194 = vmatprep.subr.mxu0 0.0
    %195 = vmatpush1.msra.mxu0 0.0
    %196 = vmatprep.subr.mxu0 0.0
    %197 = vmatpush1.msra.mxu0 0.0
    %198 = vmatprep.subr.mxu0 0.0
    %199 = vmatpush1.msra.mxu0 0.0
    %200 = vmatprep.subr.mxu0 0.0
    %201 = vmatpush1.msra.mxu0 0.0
    %202 = vmatprep.subr.mxu0 0.0
    %203 = vmatpush1.msra.mxu0 0.0
    %204 = vmatprep.subr.mxu0 0.0
    %205 = vmatpush1.msra.mxu0 0.0
    %206 = vmatprep.subr.mxu0 0.0
    %207 = vmatpush1.msra.mxu0 0.0
    %208 = vmatprep.subr.mxu0 0.0
    %209 = vmatpush1.msra.mxu0 0.0
    %210 = vmatprep.subr.mxu0 0.0
    %211 = vmatpush1.msra.mxu0 0.0
    %212 = vmatprep.subr.mxu0 0.0
    %213 = vmatpush1.msra.mxu0 0.0
    %214 = vmatprep.subr.mxu0 0.0
    %215 = vmatpush1.msra.mxu0 0.0
    %216 = vmatprep.subr.mxu0 0.0
    %217 = vmatpush1.msra.mxu0 0.0
    %218 = vmatprep.subr.mxu0 0.0
    %219 = vmatpush1.msra.mxu0 0.0
    %220 = vmatprep.mubr.f32.mxu0 0.0
    %221 = vmatmul.mubr.f32.gmra.mrb[0].mxu0 %v154
    %v222 = vpop.f32.mrb[0].mxu0
    %v223 = vadd.f32 0.0, %v222
    %v224 = vpop.f32.mrb[0].mxu0
    %v225 = vadd.f32 0.0, %v224
    %226 = vdwg.mxu0
    %227 = vmatprep.subr.mxu0 %v91
    %228 = vmatpush1.msra.mxu0 %v90
    %229 = vmatprep.subr.mxu0 %v99
    %230 = vmatpush1.msra.mxu0 %v98
    %231 = vmatprep.subr.mxu0 %v107
    %232 = vmatpush1.msra.mxu0 %v106
    %233 = vmatprep.subr.mxu0 %v115
    %234 = vmatpush1.msra.mxu0 %v114
    %235 = vmatprep.subr.mxu0 %v123
    %236 = vmatpush1.msra.mxu0 %v122
    %237 = vmatprep.subr.mxu0 %v131
    %238 = vmatpush1.msra.mxu0 %v130
    %239 = vmatprep.subr.mxu0 %v139
    %240 = vmatpush1.msra.mxu0 %v138
    %241 = vmatprep.subr.mxu0 %v147
    %242 = vmatpush1.msra.mxu0 %v146
    %243 = vmatprep.subr.mxu0 0.0
    %244 = vmatpush1.msra.mxu0 0.0
    %245 = vmatprep.subr.mxu0 0.0
    %246 = vmatpush1.msra.mxu0 0.0
    %247 = vmatprep.subr.mxu0 0.0
    %248 = vmatpush1.msra.mxu0 0.0
    %249 = vmatprep.subr.mxu0 0.0
    %250 = vmatpush1.msra.mxu0 0.0
    %251 = vmatprep.subr.mxu0 0.0
    %252 = vmatpush1.msra.mxu0 0.0
    %253 = vmatprep.subr.mxu0 0.0
    %254 = vmatpush1.msra.mxu0 0.0
    %255 = vmatprep.subr.mxu0 0.0
    %256 = vmatpush1.msra.mxu0 0.0
    %257 = vmatprep.subr.mxu0 0.0
    %258 = vmatpush1.msra.mxu0 0.0
    %259 = vmatprep.subr.mxu0 0.0
    %260 = vmatpush1.msra.mxu0 0.0
    %261 = vmatprep.subr.mxu0 0.0
    %262 = vmatpush1.msra.mxu0 0.0
    %263 = vmatprep.subr.mxu0 0.0
    %264 = vmatpush1.msra.mxu0 0.0
    %265 = vmatprep.subr.mxu0 0.0
    %266 = vmatpush1.msra.mxu0 0.0
    %267 = vmatprep.subr.mxu0 0.0
    %268 = vmatpush1.msra.mxu0 0.0
    %269 = vmatprep.subr.mxu0 0.0
    %270 = vmatpush1.msra.mxu0 0.0
    %271 = vmatprep.subr.mxu0 0.0
    %272 = vmatpush1.msra.mxu0 0.0
    %273 = vmatprep.subr.mxu0 0.0
    %274 = vmatpush1.msra.mxu0 0.0
    %275 = vmatprep.subr.mxu0 0.0
    %276 = vmatpush1.msra.mxu0 0.0
    %277 = vmatprep.subr.mxu0 0.0
    %278 = vmatpush1.msra.mxu0 0.0
    %279 = vmatprep.subr.mxu0 0.0
    %280 = vmatpush1.msra.mxu0 0.0
    %281 = vmatprep.subr.mxu0 0.0
    %282 = vmatpush1.msra.mxu0 0.0
    %283 = vmatprep.subr.mxu0 0.0
    %284 = vmatpush1.msra.mxu0 0.0
    %285 = vmatprep.subr.mxu0 0.0
    %286 = vmatpush1.msra.mxu0 0.0
    %287 = vmatprep.subr.mxu0 0.0
    %288 = vmatpush1.msra.mxu0 0.0
    %289 = vmatprep.subr.mxu0 0.0
    %290 = vmatpush1.msra.mxu0 0.0
    %291 = vmatprep.mubr.f32.mxu0 0.0
    %292 = vmatmul.mubr.f32.gmra.mrb[0].mxu0 %v154
    %v293 = vpop.f32.mrb[0].mxu0
    %v294 = vadd.f32 0.0, %v293
    %v295 = vpop.f32.mrb[0].mxu0
    %v296 = vadd.f32 0.0, %v295
    %297 = vdwg.mxu0
    %298 = vmatprep.subr.mxu0 %v93
    %299 = vmatpush1.msra.mxu0 %v92
    %300 = vmatprep.subr.mxu0 %v101
    %301 = vmatpush1.msra.mxu0 %v100
    %302 = vmatprep.subr.mxu0 %v109
    %303 = vmatpush1.msra.mxu0 %v108
    %304 = vmatprep.subr.mxu0 %v117
    %305 = vmatpush1.msra.mxu0 %v116
    %306 = vmatprep.subr.mxu0 %v125
    %307 = vmatpush1.msra.mxu0 %v124
    %308 = vmatprep.subr.mxu0 %v133
    %309 = vmatpush1.msra.mxu0 %v132
    %310 = vmatprep.subr.mxu0 %v141
    %311 = vmatpush1.msra.mxu0 %v140
    %312 = vmatprep.subr.mxu0 %v149
    %313 = vmatpush1.msra.mxu0 %v148
    %314 = vmatprep.subr.mxu0 0.0
    %315 = vmatpush1.msra.mxu0 0.0
    %316 = vmatprep.subr.mxu0 0.0
    %317 = vmatpush1.msra.mxu0 0.0
    %318 = vmatprep.subr.mxu0 0.0
    %319 = vmatpush1.msra.mxu0 0.0
    %320 = vmatprep.subr.mxu0 0.0
    %321 = vmatpush1.msra.mxu0 0.0
    %322 = vmatprep.subr.mxu0 0.0
    %323 = vmatpush1.msra.mxu0 0.0
    %324 = vmatprep.subr.mxu0 0.0
    %325 = vmatpush1.msra.mxu0 0.0
    %326 = vmatprep.subr.mxu0 0.0
    %327 = vmatpush1.msra.mxu0 0.0
    %328 = vmatprep.subr.mxu0 0.0
    %329 = vmatpush1.msra.mxu0 0.0
    %330 = vmatprep.subr.mxu0 0.0
    %331 = vmatpush1.msra.mxu0 0.0
    %332 = vmatprep.subr.mxu0 0.0
    %333 = vmatpush1.msra.mxu0 0.0
    %334 = vmatprep.subr.mxu0 0.0
    %335 = vmatpush1.msra.mxu0 0.0
    %336 = vmatprep.subr.mxu0 0.0
    %337 = vmatpush1.msra.mxu0 0.0
    %338 = vmatprep.subr.mxu0 0.0
    %339 = vmatpush1.msra.mxu0 0.0
    %340 = vmatprep.subr.mxu0 0.0
    %341 = vmatpush1.msra.mxu0 0.0
    %342 = vmatprep.subr.mxu0 0.0
    %343 = vmatpush1.msra.mxu0 0.0
    %344 = vmatprep.subr.mxu0 0.0
    %345 = vmatpush1.msra.mxu0 0.0
    %346 = vmatprep.subr.mxu0 0.0
    %347 = vmatpush1.msra.mxu0 0.0
    %348 = vmatprep.subr.mxu0 0.0
    %349 = vmatpush1.msra.mxu0 0.0
    %350 = vmatprep.subr.mxu0 0.0
    %351 = vmatpush1.msra.mxu0 0.0
    %352 = vmatprep.subr.mxu0 0.0
    %353 = vmatpush1.msra.mxu0 0.0
    %354 = vmatprep.subr.mxu0 0.0
    %355 = vmatpush1.msra.mxu0 0.0
    %356 = vmatprep.subr.mxu0 0.0
    %357 = vmatpush1.msra.mxu0 0.0
    %358 = vmatprep.subr.mxu0 0.0
    %359 = vmatpush1.msra.mxu0 0.0
    %360 = vmatprep.subr.mxu0 0.0
    %361 = vmatpush1.msra.mxu0 0.0
    %362 = vmatprep.mubr.f32.mxu0 0.0
    %363 = vmatmul.mubr.f32.gmra.mrb[0].mxu0 %v154
    %v364 = vpop.f32.mrb[0].mxu0
    %v365 = vadd.f32 0.0, %v364
    %v366 = vpop.f32.mrb[0].mxu0
    %v367 = vadd.f32 0.0, %v366
    %368 = vdwg.mxu0
    %369 = vmatprep.subr.mxu0 %v95
    %370 = vmatpush1.msra.mxu0 %v94
    %371 = vmatprep.subr.mxu0 %v103
    %372 = vmatpush1.msra.mxu0 %v102
    %373 = vmatprep.subr.mxu0 %v111
    %374 = vmatpush1.msra.mxu0 %v110
    %375 = vmatprep.subr.mxu0 %v119
    %376 = vmatpush1.msra.mxu0 %v118
    %377 = vmatprep.subr.mxu0 %v127
    %378 = vmatpush1.msra.mxu0 %v126
    %379 = vmatprep.subr.mxu0 %v135
    %380 = vmatpush1.msra.mxu0 %v134
    %381 = vmatprep.subr.mxu0 %v143
    %382 = vmatpush1.msra.mxu0 %v142
    %383 = vmatprep.subr.mxu0 %v151
    %384 = vmatpush1.msra.mxu0 %v150
    %385 = vmatprep.subr.mxu0 0.0
    %386 = vmatpush1.msra.mxu0 0.0
    %387 = vmatprep.subr.mxu0 0.0
    %388 = vmatpush1.msra.mxu0 0.0
    %389 = vmatprep.subr.mxu0 0.0
    %390 = vmatpush1.msra.mxu0 0.0
    %391 = vmatprep.subr.mxu0 0.0
    %392 = vmatpush1.msra.mxu0 0.0
    %393 = vmatprep.subr.mxu0 0.0
    %394 = vmatpush1.msra.mxu0 0.0
    %395 = vmatprep.subr.mxu0 0.0
    %396 = vmatpush1.msra.mxu0 0.0
    %397 = vmatprep.subr.mxu0 0.0
    %398 = vmatpush1.msra.mxu0 0.0
    %399 = vmatprep.subr.mxu0 0.0
    %400 = vmatpush1.msra.mxu0 0.0
    %401 = vmatprep.subr.mxu0 0.0
    %402 = vmatpush1.msra.mxu0 0.0
    %403 = vmatprep.subr.mxu0 0.0
    %404 = vmatpush1.msra.mxu0 0.0
    %405 = vmatprep.subr.mxu0 0.0
    %406 = vmatpush1.msra.mxu0 0.0
    %407 = vmatprep.subr.mxu0 0.0
    %408 = vmatpush1.msra.mxu0 0.0
    %409 = vmatprep.subr.mxu0 0.0
    %410 = vmatpush1.msra.mxu0 0.0
    %411 = vmatprep.subr.mxu0 0.0
    %412 = vmatpush1.msra.mxu0 0.0
    %413 = vmatprep.subr.mxu0 0.0
    %414 = vmatpush1.msra.mxu0 0.0
    %415 = vmatprep.subr.mxu0 0.0
    %416 = vmatpush1.msra.mxu0 0.0
    %417 = vmatprep.subr.mxu0 0.0
    %418 = vmatpush1.msra.mxu0 0.0
    %419 = vmatprep.subr.mxu0 0.0
    %420 = vmatpush1.msra.mxu0 0.0
    %421 = vmatprep.subr.mxu0 0.0
    %422 = vmatpush1.msra.mxu0 0.0
    %423 = vmatprep.subr.mxu0 0.0
    %424 = vmatpush1.msra.mxu0 0.0
    %425 = vmatprep.subr.mxu0 0.0
    %426 = vmatpush1.msra.mxu0 0.0
    %427 = vmatprep.subr.mxu0 0.0
    %428 = vmatpush1.msra.mxu0 0.0
    %429 = vmatprep.subr.mxu0 0.0
    %430 = vmatpush1.msra.mxu0 0.0
    %431 = vmatprep.subr.mxu0 0.0
    %432 = vmatpush1.msra.mxu0 0.0
    %433 = vmatprep.mubr.f32.mxu0 0.0
    %434 = vmatmul.mubr.f32.gmra.mrb[0].mxu0 %v154
    %v435 = vpop.f32.mrb[0].mxu0
    %v436 = vadd.f32 0.0, %v435
    %v437 = vpop.f32.mrb[0].mxu0
    %v438 = vadd.f32 0.0, %v437
    %439 = vdwg.mxu0
    %vm440 = vcmask 516096
    %441 = vst.msk [vmem:[#allocation2] sm:$0x1] %vm440, 0.0
    %442 = vst.msk [vmem:[#allocation2 + $0x11] sm:$0x1] %vm440, 0.0
    %443 = vst.msk [vmem:[#allocation2 + $0x1] sm:$0x1] %vm440, %v223
    %445 = vrot.lane.b32.xlu0 %v223, 64
    %v446 = vpop.permute.xlu0 %445
    %448 = vst.msk [vmem:[#allocation2 + $0x2] sm:$0x1] %vm440, %v446
    %449 = vst.msk [vmem:[#allocation2 + $0x3] sm:$0x1] %vm440, %v225
    %451 = vrot.lane.b32.xlu0 %v225, 64
    %v452 = vpop.permute.xlu0 %451
    %454 = vst.msk [vmem:[#allocation2 + $0x4] sm:$0x1] %vm440, %v452
    %455 = vst.msk [vmem:[#allocation2 + $0x5] sm:$0x1] %vm440, %v294
    %457 = vrot.lane.b32.xlu0 %v294, 64
    %v458 = vpop.permute.xlu0 %457
    %460 = vst.msk [vmem:[#allocation2 + $0x6] sm:$0x1] %vm440, %v458
    %461 = vst.msk [vmem:[#allocation2 + $0x7] sm:$0x1] %vm440, %v296
    %463 = vrot.lane.b32.xlu0 %v296, 64
    %v464 = vpop.permute.xlu0 %463
    %466 = vst.msk [vmem:[#allocation2 + $0x8] sm:$0x1] %vm440, %v464
    %467 = vst.msk [vmem:[#allocation2 + $0x9] sm:$0x1] %vm440, %v365
    %469 = vrot.lane.b32.xlu0 %v365, 64
    %v470 = vpop.permute.xlu0 %469
    %472 = vst.msk [vmem:[#allocation2 + $0xa] sm:$0x1] %vm440, %v470
    %473 = vst.msk [vmem:[#allocation2 + $0xb] sm:$0x1] %vm440, %v367
    %475 = vrot.lane.b32.xlu0 %v367, 64
    %v476 = vpop.permute.xlu0 %475
    %478 = vst.msk [vmem:[#allocation2 + $0xc] sm:$0x1] %vm440, %v476
    %479 = vst.msk [vmem:[#allocation2 + $0xd] sm:$0x1] %vm440, %v436
    %481 = vrot.lane.b32.xlu0 %v436, 64
    %v482 = vpop.permute.xlu0 %481
    %484 = vst.msk [vmem:[#allocation2 + $0xe] sm:$0x1] %vm440, %v482
    %485 = vst.msk [vmem:[#allocation2 + $0xf] sm:$0x1] %vm440, %v438
    %487 = vrot.lane.b32.xlu0 %v438, 64
    %v488 = vpop.permute.xlu0 %487
    %490 = vst.msk [vmem:[#allocation2 + $0x10] sm:$0x1] %vm440, %v488
    %491 = vst.msk [vmem:[#allocation2 + $0x12] sm:$0x1] %vm440, 0.0
    %492 = vst.msk [vmem:[#allocation2 + $0x23] sm:$0x1] %vm440, 0.0
    %vm493 = vcmask 517121
    %494 = vst.msk [vmem:[#allocation2 + $0x12] sm:$0x2] %vm493, %v223
    %495 = vst.msk [vmem:[#allocation2 + $0x13] sm:$0x2] %vm493, %v446
    %496 = vst.msk [vmem:[#allocation2 + $0x14] sm:$0x2] %vm493, %v225
    %497 = vst.msk [vmem:[#allocation2 + $0x15] sm:$0x2] %vm493, %v452
    %498 = vst.msk [vmem:[#allocation2 + $0x16] sm:$0x2] %vm493, %v294
    %499 = vst.msk [vmem:[#allocation2 + $0x17] sm:$0x2] %vm493, %v458
    %500 = vst.msk [vmem:[#allocation2 + $0x18] sm:$0x2] %vm493, %v296
    %501 = vst.msk [vmem:[#allocation2 + $0x19] sm:$0x2] %vm493, %v464
    %502 = vst.msk [vmem:[#allocation2 + $0x1a] sm:$0x2] %vm493, %v365
    %503 = vst.msk [vmem:[#allocation2 + $0x1b] sm:$0x2] %vm493, %v470
    %504 = vst.msk [vmem:[#allocation2 + $0x1c] sm:$0x2] %vm493, %v367
    %505 = vst.msk [vmem:[#allocation2 + $0x1d] sm:$0x2] %vm493, %v476
    %506 = vst.msk [vmem:[#allocation2 + $0x1e] sm:$0x2] %vm493, %v436
    %507 = vst.msk [vmem:[#allocation2 + $0x1f] sm:$0x2] %vm493, %v482
    %508 = vst.msk [vmem:[#allocation2 + $0x20] sm:$0x2] %vm493, %v438
    %509 = vst.msk [vmem:[#allocation2 + $0x21] sm:$0x2] %vm493, %v488
    %v510 = vld [vmem:[#allocation2] sm:$0xff]
    %v511 = vld [vmem:[#allocation2 + $0x8] sm:$0xff]
    %v512 = vld [vmem:[#allocation2 + $0x10] sm:$0x3]
    %vm515 = vcmask 1046528
    %v516 = vrot.slane %v511, 1
    %v517 = vrot.slane %v512, 1
    %v518 = vsel %vm515, %v516, %v517
    %519 = vrot.lane.b32.xlu0 %v518, 64
    %v520 = vpop.permute.xlu0 %519
    %v523 = vrot.slane %v510, 1
    %v524 = vsel %vm515, %v523, %v516
    %v525 = vsel %vm152, %v510, %v520
    %526 = vrot.lane.b32.xlu0 %v510, 64
    %v527 = vpop.permute.xlu0 %526
    %528 = vrot.lane.b32.xlu0 %v511, 64
    %v529 = vpop.permute.xlu0 %528
    %v532 = vsel %vm152, %v511, %v527
    %v533 = vsel %vm152, %v512, %v529
    %v534 = vld [vmem:[#allocation2 + $0x12] sm:$0xff]
    %v535 = vld [vmem:[#allocation2 + $0x1a] sm:$0xff]
    %v536 = vld [vmem:[#allocation2 + $0x22] sm:$0x3]
    %v539 = vrot.slane %v535, 1
    %v540 = vrot.slane %v536, 1
    %v541 = vsel %vm515, %v539, %v540
    %542 = vrot.lane.b32.xlu0 %v541, 64
    %v543 = vpop.permute.xlu0 %542
    %v546 = vrot.slane %v534, 1
    %v547 = vsel %vm515, %v546, %v539
    %v548 = vsel %vm152, %v534, %v543
    %549 = vrot.lane.b32.xlu0 %v534, 64
    %v550 = vpop.permute.xlu0 %549
    %551 = vrot.lane.b32.xlu0 %v535, 64
    %v552 = vpop.permute.xlu0 %551
    %v555 = vsel %vm152, %v535, %v550
    %v556 = vsel %vm152, %v536, %v552
    %v557 = vld [vmem:[#allocation10] sm:$0xff]
    %v558 = vld [vmem:[#allocation10 + $0x8] sm:$0xff]
    %v559 = vld [vmem:[#allocation10 + $0x10] sm:$0xff]
    %v560 = vld [vmem:[#allocation10 + $0x18] sm:$0xff]
    %v561 = vld [vmem:[#allocation10 + $0x20] sm:$0xff]
    %v562 = vld [vmem:[#allocation10 + $0x28] sm:$0xff]
    %v563 = vld [vmem:[#allocation10 + $0x30] sm:$0xff]
    %v564 = vld [vmem:[#allocation10 + $0x38] sm:$0xff]
    %v565 = vld [vmem:[#allocation10 + $0x40] sm:$0xff]
    %v566 = vld [vmem:[#allocation10 + $0x48] sm:$0xff]
    %v567 = vld [vmem:[#allocation10 + $0x50] sm:$0xff]
    %v568 = vld [vmem:[#allocation10 + $0x58] sm:$0xff]
    %v569 = vld [vmem:[#allocation10 + $0x60] sm:$0xff]
    %v570 = vld [vmem:[#allocation10 + $0x68] sm:$0xff]
    %v571 = vld [vmem:[#allocation10 + $0x70] sm:$0xff]
    %v572 = vld [vmem:[#allocation10 + $0x78] sm:$0xff]
    %v573 = vld [vmem:[#allocation10 + $0x80] sm:$0xff]
    %v574 = vld [vmem:[#allocation10 + $0x88] sm:$0xff]
    %v575 = vld [vmem:[#allocation10 + $0x90] sm:$0xff]
    %v576 = vld [vmem:[#allocation10 + $0x98] sm:$0xff]
    %v577 = vld [vmem:[#allocation10 + $0xa0] sm:$0xff]
    %v578 = vld [vmem:[#allocation10 + $0xa8] sm:$0xff]
    %v579 = vld [vmem:[#allocation10 + $0xb0] sm:$0xff]
    %v580 = vld [vmem:[#allocation10 + $0xb8] sm:$0xff]
    %v581 = vsel %vm152, %v524, 0
    %v583 = vsel %vm152, %v547, 0
    %585 = vmatprep.subr.mxu0 0.0
    %586 = vmatpush1.msra.mxu0 %v557
    %587 = vmatprep.subr.mxu0 0.0
    %588 = vmatpush1.msra.mxu0 %v558
    %589 = vmatprep.subr.mxu0 0.0
    %590 = vmatpush1.msra.mxu0 %v559
    %591 = vmatprep.subr.mxu0 0.0
    %592 = vmatpush1.msra.mxu0 %v560
    %593 = vmatprep.subr.mxu0 0.0
    %594 = vmatpush1.msra.mxu0 %v561
    %595 = vmatprep.subr.mxu0 0.0
    %596 = vmatpush1.msra.mxu0 %v562
    %597 = vmatprep.subr.mxu0 0.0
    %598 = vmatpush1.msra.mxu0 %v563
    %599 = vmatprep.subr.mxu0 0.0
    %600 = vmatpush1.msra.mxu0 %v564
    %601 = vmatprep.subr.mxu0 0.0
    %602 = vmatpush1.msra.mxu0 %v565
    %603 = vmatprep.subr.mxu0 0.0
    %604 = vmatpush1.msra.mxu0 %v566
    %605 = vmatprep.subr.mxu0 0.0
    %606 = vmatpush1.msra.mxu0 %v567
    %607 = vmatprep.subr.mxu0 0.0
    %608 = vmatpush1.msra.mxu0 %v568
    %609 = vmatprep.subr.mxu0 0.0
    %610 = vmatpush1.msra.mxu0 %v569
    %611 = vmatprep.subr.mxu0 0.0
    %612 = vmatpush1.msra.mxu0 %v570
    %613 = vmatprep.subr.mxu0 0.0
    %614 = vmatpush1.msra.mxu0 %v571
    %615 = vmatprep.subr.mxu0 0.0
    %616 = vmatpush1.msra.mxu0 %v572
    %617 = vmatprep.subr.mxu0 0.0
    %618 = vmatpush1.msra.mxu0 %v573
    %619 = vmatprep.subr.mxu0 0.0
    %620 = vmatpush1.msra.mxu0 %v574
    %621 = vmatprep.subr.mxu0 0.0
    %622 = vmatpush1.msra.mxu0 %v575
    %623 = vmatprep.subr.mxu0 0.0
    %624 = vmatpush1.msra.mxu0 %v576
    %625 = vmatprep.subr.mxu0 0.0
    %626 = vmatpush1.msra.mxu0 %v577
    %627 = vmatprep.subr.mxu0 0.0
    %628 = vmatpush1.msra.mxu0 %v578
    %629 = vmatprep.subr.mxu0 0.0
    %630 = vmatpush1.msra.mxu0 %v579
    %631 = vmatprep.subr.mxu0 0.0
    %632 = vmatpush1.msra.mxu0 %v580
    %633 = vmatprep.subr.mxu0 0.0
    %634 = vmatpush1.msra.mxu0 0.0
    %635 = vmatprep.subr.mxu0 0.0
    %636 = vmatpush1.msra.mxu0 0.0
    %637 = vmatprep.subr.mxu0 0.0
    %638 = vmatpush1.msra.mxu0 0.0
    %639 = vmatprep.subr.mxu0 0.0
    %640 = vmatpush1.msra.mxu0 0.0
    %641 = vmatprep.subr.mxu0 0.0
    %642 = vmatpush1.msra.mxu0 0.0
    %643 = vmatprep.subr.mxu0 0.0
    %644 = vmatpush1.msra.mxu0 0.0
    %645 = vmatprep.subr.mxu0 0.0
    %646 = vmatpush1.msra.mxu0 0.0
    %647 = vmatprep.subr.mxu0 0.0
    %648 = vmatpush1.msra.mxu0 0.0
    %649 = vmatprep.mubr.f32.mxu0 %v581
    %650 = vmatmul.mubr.f32.gmra.mrb[0].mxu0 %v525
    %v651 = vpop.f32.mrb[0].mxu0
    %v652 = vadd.f32 0.0, %v651
    %v653 = vpop.f32.mrb[0].mxu0
    %654 = vmatprep.mubr.f32.mxu0 %v583
    %655 = vmatmul.mubr.f32.gmra.mrb[0].mxu0 %v548
    %v656 = vpop.f32.mrb[0].mxu0
    %v657 = vadd.f32 0.0, %v656
    %v658 = vpop.f32.mrb[0].mxu0
    %659 = vdwg.mxu0
    %v662 = vrot.slane %v532, 1
    %v663 = vrot.slane %v533, 1
    %v664 = vsel %vm515, %v662, %v663
    %v665 = vrot.slane %v518, 1
    %v666 = vrot.slane %v517, 1
    %v667 = vsel %vm515, %v665, %v666
    %v671 = vrot.slane %v555, 1
    %v672 = vrot.slane %v556, 1
    %v673 = vsel %vm515, %v671, %v672
    %v674 = vrot.slane %v541, 1
    %v675 = vrot.slane %v540, 1
    %v676 = vsel %vm515, %v674, %v675
    %v678 = vsel %vm152, %v667, 0
    %v680 = vsel %vm152, %v676, 0
    %682 = vmatprep.subr.mxu0 0.0
    %683 = vmatpush1.msra.mxu0 %v557
    %684 = vmatprep.subr.mxu0 0.0
    %685 = vmatpush1.msra.mxu0 %v558
    %686 = vmatprep.subr.mxu0 0.0
    %687 = vmatpush1.msra.mxu0 %v559
    %688 = vmatprep.subr.mxu0 0.0
    %689 = vmatpush1.msra.mxu0 %v560
    %690 = vmatprep.subr.mxu0 0.0
    %691 = vmatpush1.msra.mxu0 %v561
    %692 = vmatprep.subr.mxu0 0.0
    %693 = vmatpush1.msra.mxu0 %v562
    %694 = vmatprep.subr.mxu0 0.0
    %695 = vmatpush1.msra.mxu0 %v563
    %696 = vmatprep.subr.mxu0 0.0
    %697 = vmatpush1.msra.mxu0 %v564
    %698 = vmatprep.subr.mxu0 0.0
    %699 = vmatpush1.msra.mxu0 %v565
    %700 = vmatprep.subr.mxu0 0.0
    %701 = vmatpush1.msra.mxu0 %v566
    %702 = vmatprep.subr.mxu0 0.0
    %703 = vmatpush1.msra.mxu0 %v567
    %704 = vmatprep.subr.mxu0 0.0
    %705 = vmatpush1.msra.mxu0 %v568
    %706 = vmatprep.subr.mxu0 0.0
    %707 = vmatpush1.msra.mxu0 %v569
    %708 = vmatprep.subr.mxu0 0.0
    %709 = vmatpush1.msra.mxu0 %v570
    %710 = vmatprep.subr.mxu0 0.0
    %711 = vmatpush1.msra.mxu0 %v571
    %712 = vmatprep.subr.mxu0 0.0
    %713 = vmatpush1.msra.mxu0 %v572
    %714 = vmatprep.subr.mxu0 0.0
    %715 = vmatpush1.msra.mxu0 %v573
    %716 = vmatprep.subr.mxu0 0.0
    %717 = vmatpush1.msra.mxu0 %v574
    %718 = vmatprep.subr.mxu0 0.0
    %719 = vmatpush1.msra.mxu0 %v575
    %720 = vmatprep.subr.mxu0 0.0
    %721 = vmatpush1.msra.mxu0 %v576
    %722 = vmatprep.subr.mxu0 0.0
    %723 = vmatpush1.msra.mxu0 %v577
    %724 = vmatprep.subr.mxu0 0.0
    %725 = vmatpush1.msra.mxu0 %v578
    %726 = vmatprep.subr.mxu0 0.0
    %727 = vmatpush1.msra.mxu0 %v579
    %728 = vmatprep.subr.mxu0 0.0
    %729 = vmatpush1.msra.mxu0 %v580
    %730 = vmatprep.subr.mxu0 0.0
    %731 = vmatpush1.msra.mxu0 0.0
    %732 = vmatprep.subr.mxu0 0.0
    %733 = vmatpush1.msra.mxu0 0.0
    %734 = vmatprep.subr.mxu0 0.0
    %735 = vmatpush1.msra.mxu0 0.0
    %736 = vmatprep.subr.mxu0 0.0
    %737 = vmatpush1.msra.mxu0 0.0
    %738 = vmatprep.subr.mxu0 0.0
    %739 = vmatpush1.msra.mxu0 0.0
    %740 = vmatprep.subr.mxu0 0.0
    %741 = vmatpush1.msra.mxu0 0.0
    %742 = vmatprep.subr.mxu0 0.0
    %743 = vmatpush1.msra.mxu0 0.0
    %744 = vmatprep.subr.mxu0 0.0
    %745 = vmatpush1.msra.mxu0 0.0
    %746 = vmatprep.mubr.f32.mxu0 %v678
    %747 = vmatmul.mubr.f32.gmra.mrb[0].mxu0 %v664
    %v748 = vpop.f32.mrb[0].mxu0
    %v749 = vadd.f32 0.0, %v748
    %v750 = vpop.f32.mrb[0].mxu0
    %751 = vmatprep.mubr.f32.mxu0 %v680
    %752 = vmatmul.mubr.f32.gmra.mrb[0].mxu0 %v673
    %v753 = vpop.f32.mrb[0].mxu0
    %v754 = vadd.f32 0.0, %v753
    %v755 = vpop.f32.mrb[0].mxu0
    %756 = vdwg.mxu0
    %v757 = vmax.f32 %v652, %v749
    %v758 = vmax.f32 %v657, %v754
    %761 = vrot.lane.b32.xlu0 %v757, 64
    %v762 = vpop.permute.xlu0 %761
    %763 = vrot.lane.b32.xlu0 %v758, 64
    %v764 = vpop.permute.xlu0 %763
    %v767 = vmax.f32 %v757, %v762
    %v768 = vmax.f32 %v758, %v764
    %v769 = vmax.f32 %v767, 0.0
    %v770 = vmax.f32 %v768, 0.0
    %771 = vst.msk [vmem:[#allocation3] sm:$0x1] %vm440, 0.0
    %772 = vst.msk [vmem:[#allocation3 + $0x9] sm:$0x1] %vm440, 0.0
    %773 = vst.msk [vmem:[#allocation3 + $0x1] sm:$0xff] %vm152, %v769
    %774 = vst.msk [vmem:[#allocation3 + $0xa] sm:$0x1] %vm440, 0.0
    %775 = vst.msk [vmem:[#allocation3 + $0x13] sm:$0x1] %vm440, 0.0
    %776 = vst.msk [vmem:[#allocation3 + $0xb] sm:$0xff] %vm152, %v770
    %v777 = vld [vmem:[#allocation3] sm:$0xff]
    %v778 = vld [vmem:[#allocation3 + $0x8] sm:$0x3]
    %v781 = vrot.slane %v777, 1
    %v782 = vrot.slane %v778, 1
    %v783 = vsel %vm515, %v781, %v782
    %784 = vrot.lane.b32.xlu0 %v783, 64
    %v785 = vpop.permute.xlu0 %784
    %vm787 = vcmask 1045504
    %v788 = vrot.slane %v777, 2
    %v789 = vrot.slane %v778, 2
    %v790 = vsel %vm787, %v788, %v789
    %v791 = vsel %vm152, %v777, %v785
    %v792 = vld [vmem:[#allocation3 + $0xa] sm:$0xff]
    %v793 = vld [vmem:[#allocation3 + $0x12] sm:$0x3]
    %v796 = vrot.slane %v792, 1
    %v797 = vrot.slane %v793, 1
    %v798 = vsel %vm515, %v796, %v797
    %799 = vrot.lane.b32.xlu0 %v798, 64
    %v800 = vpop.permute.xlu0 %799
    %v802 = vrot.slane %v792, 2
    %v803 = vrot.slane %v793, 2
    %v804 = vsel %vm787, %v802, %v803
    %v805 = vsel %vm152, %v792, %v800
    %v806 = vld [vmem:[#allocation11] sm:$0xff]
    %v807 = vld [vmem:[#allocation11 + $0x8] sm:$0xff]
    %v808 = vld [vmem:[#allocation11 + $0x10] sm:$0xff]
    %v809 = vld [vmem:[#allocation11 + $0x18] sm:$0xff]
    %v810 = vld [vmem:[#allocation11 + $0x20] sm:$0xff]
    %v811 = vld [vmem:[#allocation11 + $0x28] sm:$0xff]
    %v812 = vld [vmem:[#allocation11 + $0x30] sm:$0xff]
    %v813 = vld [vmem:[#allocation11 + $0x38] sm:$0xff]
    %v814 = vld [vmem:[#allocation11 + $0x40] sm:$0xff]
    %v815 = vld [vmem:[#allocation11 + $0x48] sm:$0xff]
    %v816 = vld [vmem:[#allocation11 + $0x50] sm:$0xff]
    %v817 = vld [vmem:[#allocation11 + $0x58] sm:$0xff]
    %v818 = vld [vmem:[#allocation11 + $0x60] sm:$0xff]
    %v819 = vld [vmem:[#allocation11 + $0x68] sm:$0xff]
    %v820 = vld [vmem:[#allocation11 + $0x70] sm:$0xff]
    %v821 = vld [vmem:[#allocation11 + $0x78] sm:$0xff]
    %v822 = vld [vmem:[#allocation11 + $0x80] sm:$0xff]
    %v823 = vld [vmem:[#allocation11 + $0x88] sm:$0xff]
    %v824 = vld [vmem:[#allocation11 + $0x90] sm:$0xff]
    %v825 = vld [vmem:[#allocation11 + $0x98] sm:$0xff]
    %v826 = vld [vmem:[#allocation11 + $0xa0] sm:$0xff]
    %v827 = vld [vmem:[#allocation11 + $0xa8] sm:$0xff]
    %v828 = vld [vmem:[#allocation11 + $0xb0] sm:$0xff]
    %v829 = vld [vmem:[#allocation11 + $0xb8] sm:$0xff]
    %v830 = vsel %vm152, %v790, 0
    %v832 = vsel %vm152, %v804, 0
    %834 = vmatprep.subr.mxu0 0.0
    %835 = vmatpush1.msra.mxu0 %v806
    %836 = vmatprep.subr.mxu0 0.0
    %837 = vmatpush1.msra.mxu0 %v807
    %838 = vmatprep.subr.mxu0 0.0
    %839 = vmatpush1.msra.mxu0 %v808
    %840 = vmatprep.subr.mxu0 0.0
    %841 = vmatpush1.msra.mxu0 %v809
    %842 = vmatprep.subr.mxu0 0.0
    %843 = vmatpush1.msra.mxu0 %v810
    %844 = vmatprep.subr.mxu0 0.0
    %845 = vmatpush1.msra.mxu0 %v811
    %846 = vmatprep.subr.mxu0 0.0
    %847 = vmatpush1.msra.mxu0 %v812
    %848 = vmatprep.subr.mxu0 0.0
    %849 = vmatpush1.msra.mxu0 %v813
    %850 = vmatprep.subr.mxu0 0.0
    %851 = vmatpush1.msra.mxu0 %v814
    %852 = vmatprep.subr.mxu0 0.0
    %853 = vmatpush1.msra.mxu0 %v815
    %854 = vmatprep.subr.mxu0 0.0
    %855 = vmatpush1.msra.mxu0 %v816
    %856 = vmatprep.subr.mxu0 0.0
    %857 = vmatpush1.msra.mxu0 %v817
    %858 = vmatprep.subr.mxu0 0.0
    %859 = vmatpush1.msra.mxu0 %v818
    %860 = vmatprep.subr.mxu0 0.0
    %861 = vmatpush1.msra.mxu0 %v819
    %862 = vmatprep.subr.mxu0 0.0
    %863 = vmatpush1.msra.mxu0 %v820
    %864 = vmatprep.subr.mxu0 0.0
    %865 = vmatpush1.msra.mxu0 %v821
    %866 = vmatprep.subr.mxu0 0.0
    %867 = vmatpush1.msra.mxu0 %v822
    %868 = vmatprep.subr.mxu0 0.0
    %869 = vmatpush1.msra.mxu0 %v823
    %870 = vmatprep.subr.mxu0 0.0
    %871 = vmatpush1.msra.mxu0 %v824
    %872 = vmatprep.subr.mxu0 0.0
    %873 = vmatpush1.msra.mxu0 %v825
    %874 = vmatprep.subr.mxu0 0.0
    %875 = vmatpush1.msra.mxu0 %v826
    %876 = vmatprep.subr.mxu0 0.0
    %877 = vmatpush1.msra.mxu0 %v827
    %878 = vmatprep.subr.mxu0 0.0
    %879 = vmatpush1.msra.mxu0 %v828
    %880 = vmatprep.subr.mxu0 0.0
    %881 = vmatpush1.msra.mxu0 %v829
    %882 = vmatprep.subr.mxu0 0.0
    %883 = vmatpush1.msra.mxu0 0.0
    %884 = vmatprep.subr.mxu0 0.0
    %885 = vmatpush1.msra.mxu0 0.0
    %886 = vmatprep.subr.mxu0 0.0
    %887 = vmatpush1.msra.mxu0 0.0
    %888 = vmatprep.subr.mxu0 0.0
    %889 = vmatpush1.msra.mxu0 0.0
    %890 = vmatprep.subr.mxu0 0.0
    %891 = vmatpush1.msra.mxu0 0.0
    %892 = vmatprep.subr.mxu0 0.0
    %893 = vmatpush1.msra.mxu0 0.0
    %894 = vmatprep.subr.mxu0 0.0
    %895 = vmatpush1.msra.mxu0 0.0
    %896 = vmatprep.subr.mxu0 0.0
    %897 = vmatpush1.msra.mxu0 0.0
    %898 = vmatprep.mubr.f32.mxu0 %v830
    %899 = vmatmul.mubr.f32.gmra.mrb[0].mxu0 %v791
    %v900 = vpop.f32.mrb[0].mxu0
    %v901 = vadd.f32 0.0, %v900
    %v902 = vpop.f32.mrb[0].mxu0
    %903 = vmatprep.mubr.f32.mxu0 %v832
    %904 = vmatmul.mubr.f32.gmra.mrb[0].mxu0 %v805
    %v905 = vpop.f32.mrb[0].mxu0
    %v906 = vadd.f32 0.0, %v905
    %v907 = vpop.f32.mrb[0].mxu0
    %908 = vdwg.mxu0
    %v909 = vtanh.pop %v901
    %v910 = vtanh.pop %v906
    %911 = vst [vmem:[#allocation4] sm:$0x1] %v909
    %v914 = vunpack.c.l.s4 1983009808
    %v915 = vunpack.c.0.s8 %v914
    %v916 = vlaneseq
    %v917 = vshrl.u32 %v916, 7
    %v918 = vsub.s32 %v915, %v917
    %v919 = vrot.slane %v909, %v918
    %v920 = vrot.slane %v919, 7
    %v921 = vrot.slane %v920, 2
    %923 = vst [vmem:[#allocation4 + $0x2] sm:$0x1] %v921
    %v924 = vcombine.high %v919, %v919
    %926 = vst [vmem:[#allocation4 + $0x4] sm:$0x1] %v924
    %v927 = vrot.slane %v924, 7
    %v928 = vrot.slane %v927, 2
    %930 = vst [vmem:[#allocation4 + $0x6] sm:$0x1] %v928
    %v931 = vcombine.high %v909, %v909
    %v933 = vunpack.c.l.s4 1983009808
    %v934 = vunpack.c.0.s8 %v933
    %v935 = vlaneseq
    %v936 = vshrl.u32 %v935, 7
    %v937 = vsub.s32 %v934, %v936
    %v938 = vrot.slane %v931, %v937
    %940 = vst [vmem:[#allocation4 + $0x8] sm:$0x1] %v938
    %v941 = vrot.slane %v938, 7
    %v942 = vrot.slane %v941, 2
    %944 = vst [vmem:[#allocation4 + $0xa] sm:$0x1] %v942
    %v945 = vcombine.high %v938, %v938
    %947 = vst [vmem:[#allocation4 + $0xc] sm:$0x1] %v945
    %v948 = vrot.slane %v945, 7
    %v949 = vrot.slane %v948, 2
    %951 = vst [vmem:[#allocation4 + $0xe] sm:$0x1] %v949
    %952 = vst [vmem:[#allocation4 + $0x1] sm:$0x1] %v910
    %v955 = vunpack.c.l.s4 1983009808
    %v956 = vunpack.c.0.s8 %v955
    %v957 = vlaneseq
    %v958 = vshrl.u32 %v957, 7
    %v959 = vsub.s32 %v956, %v958
    %v960 = vrot.slane %v910, %v959
    %v961 = vrot.slane %v960, 7
    %v962 = vrot.slane %v961, 2
    %964 = vst [vmem:[#allocation4 + $0x3] sm:$0x1] %v962
    %v965 = vcombine.high %v960, %v960
    %967 = vst [vmem:[#allocation4 + $0x5] sm:$0x1] %v965
    %v968 = vrot.slane %v965, 7
    %v969 = vrot.slane %v968, 2
    %971 = vst [vmem:[#allocation4 + $0x7] sm:$0x1] %v969
    %v972 = vcombine.high %v910, %v910
    %v974 = vunpack.c.l.s4 1983009808
    %v975 = vunpack.c.0.s8 %v974
    %v976 = vlaneseq
    %v977 = vshrl.u32 %v976, 7
    %v978 = vsub.s32 %v975, %v977
    %v979 = vrot.slane %v972, %v978
    %981 = vst [vmem:[#allocation4 + $0x9] sm:$0x1] %v979
    %v982 = vrot.slane %v979, 7
    %v983 = vrot.slane %v982, 2
    %985 = vst [vmem:[#allocation4 + $0xb] sm:$0x1] %v983
    %v986 = vcombine.high %v979, %v979
    %988 = vst [vmem:[#allocation4 + $0xd] sm:$0x1] %v986
    %v989 = vrot.slane %v986, 7
    %v990 = vrot.slane %v989, 2
    %992 = vst [vmem:[#allocation4 + $0xf] sm:$0x1] %v990
    %v993 = vld [vmem:[#allocation4] sm:$0xff]
    %v994 = vld [vmem:[#allocation4 + $0x8] sm:$0xff]
    %v995 = vld [vmem:[#allocation13] sm:$0xff]
    %v996 = vld [vmem:[#allocation13 + $0x8] sm:$0xff]
    %v997 = vld [vmem:[#allocation13 + $0x10] sm:$0xff]
    %v998 = vld [vmem:[#allocation13 + $0x18] sm:$0xff]
    %v999 = vld [vmem:[#allocation13 + $0x20] sm:$0xff]
    %v1000 = vld [vmem:[#allocation13 + $0x28] sm:$0xff]
    %v1001 = vld [vmem:[#allocation13 + $0x30] sm:$0xff]
    %v1002 = vld [vmem:[#allocation13 + $0x38] sm:$0xff]
    %v1003 = vld [vmem:[#allocation13 + $0x40] sm:$0xff]
    %v1004 = vld [vmem:[#allocation13 + $0x48] sm:$0xff]
    %v1005 = vld [vmem:[#allocation13 + $0x50] sm:$0xff]
    %v1006 = vld [vmem:[#allocation13 + $0x58] sm:$0xff]
    %v1007 = vld [vmem:[#allocation13 + $0x60] sm:$0xff]
    %v1008 = vld [vmem:[#allocation13 + $0x68] sm:$0xff]
    %v1009 = vld [vmem:[#allocation13 + $0x70] sm:$0xff]
    %v1010 = vld [vmem:[#allocation13 + $0x78] sm:$0xff]
    %v1011 = vld [vmem:[#allocation13 + $0x80] sm:$0xff]
    %v1012 = vld [vmem:[#allocation13 + $0x88] sm:$0xff]
    %v1013 = vld [vmem:[#allocation13 + $0x90] sm:$0xff]
    %v1014 = vld [vmem:[#allocation13 + $0x98] sm:$0xff]
    %v1015 = vld [vmem:[#allocation13 + $0xa0] sm:$0xff]
    %v1016 = vld [vmem:[#allocation13 + $0xa8] sm:$0xff]
    %v1017 = vld [vmem:[#allocation13 + $0xb0] sm:$0xff]
    %v1018 = vld [vmem:[#allocation13 + $0xb8] sm:$0xff]
    %v1019 = vld [vmem:[#allocation13 + $0xc0] sm:$0xff]
    %v1020 = vld [vmem:[#allocation13 + $0xc8] sm:$0xff]
    %v1021 = vld [vmem:[#allocation13 + $0xd0] sm:$0xff]
    %v1022 = vld [vmem:[#allocation13 + $0xd8] sm:$0xff]
    %v1023 = vld [vmem:[#allocation13 + $0xe0] sm:$0xff]
    %v1024 = vld [vmem:[#allocation13 + $0xe8] sm:$0xff]
    %v1025 = vld [vmem:[#allocation13 + $0xf0] sm:$0xff]
    %v1026 = vld [vmem:[#allocation13 + $0xf8] sm:$0xff]
    %v1027 = vld [vmem:[#allocation13 + $0x100] sm:$0xff]
    %v1028 = vld [vmem:[#allocation13 + $0x108] sm:$0xff]
    %v1029 = vld [vmem:[#allocation13 + $0x110] sm:$0xff]
    %v1030 = vld [vmem:[#allocation13 + $0x118] sm:$0xff]
    %v1031 = vld [vmem:[#allocation13 + $0x120] sm:$0xff]
    %v1032 = vld [vmem:[#allocation13 + $0x128] sm:$0xff]
    %v1033 = vld [vmem:[#allocation13 + $0x130] sm:$0xff]
    %v1034 = vld [vmem:[#allocation13 + $0x138] sm:$0xff]
    %v1035 = vld [vmem:[#allocation13 + $0x140] sm:$0xff]
    %v1036 = vld [vmem:[#allocation13 + $0x148] sm:$0xff]
    %v1037 = vld [vmem:[#allocation13 + $0x150] sm:$0xff]
    %v1038 = vld [vmem:[#allocation13 + $0x158] sm:$0xff]
    %v1039 = vld [vmem:[#allocation13 + $0x160] sm:$0xff]
    %v1040 = vld [vmem:[#allocation13 + $0x168] sm:$0xff]
    %v1041 = vld [vmem:[#allocation13 + $0x170] sm:$0xff]
    %v1042 = vld [vmem:[#allocation13 + $0x178] sm:$0xff]
    %v1043 = vld [vmem:[#allocation13 + $0x180] sm:$0xff]
    %v1044 = vld [vmem:[#allocation13 + $0x188] sm:$0xff]
    %v1045 = vld [vmem:[#allocation13 + $0x190] sm:$0xff]
    %v1046 = vld [vmem:[#allocation13 + $0x198] sm:$0xff]
    %v1047 = vld [vmem:[#allocation13 + $0x1a0] sm:$0xff]
    %v1048 = vld [vmem:[#allocation13 + $0x1a8] sm:$0xff]
    %v1049 = vld [vmem:[#allocation13 + $0x1b0] sm:$0xff]
    %v1050 = vld [vmem:[#allocation13 + $0x1b8] sm:$0xff]
    %v1051 = vld [vmem:[#allocation13 + $0x1c0] sm:$0xff]
    %v1052 = vld [vmem:[#allocation13 + $0x1c8] sm:$0xff]
    %v1053 = vld [vmem:[#allocation13 + $0x1d0] sm:$0xff]
    %v1054 = vld [vmem:[#allocation13 + $0x1d8] sm:$0xff]
    %v1055 = vld [vmem:[#allocation13 + $0x1e0] sm:$0xff]
    %v1056 = vld [vmem:[#allocation13 + $0x1e8] sm:$0xff]
    %v1057 = vld [vmem:[#allocation13 + $0x1f0] sm:$0xff]
    %v1058 = vld [vmem:[#allocation13 + $0x1f8] sm:$0xff]
    %v1059 = vld [vmem:[#allocation13 + $0x200] sm:$0xff]
    %v1060 = vld [vmem:[#allocation13 + $0x208] sm:$0xff]
    %v1061 = vld [vmem:[#allocation13 + $0x210] sm:$0xff]
    %v1062 = vld [vmem:[#allocation13 + $0x218] sm:$0xff]
    %v1063 = vld [vmem:[#allocation13 + $0x220] sm:$0xff]
    %v1064 = vld [vmem:[#allocation13 + $0x228] sm:$0xff]
    %v1065 = vld [vmem:[#allocation13 + $0x230] sm:$0xff]
    %v1066 = vld [vmem:[#allocation13 + $0x238] sm:$0xff]
    %v1067 = vld [vmem:[#allocation13 + $0x240] sm:$0xff]
    %v1068 = vld [vmem:[#allocation13 + $0x248] sm:$0xff]
    %v1069 = vld [vmem:[#allocation13 + $0x250] sm:$0xff]
    %v1070 = vld [vmem:[#allocation13 + $0x258] sm:$0xff]
    %v1071 = vld [vmem:[#allocation13 + $0x260] sm:$0xff]
    %v1072 = vld [vmem:[#allocation13 + $0x268] sm:$0xff]
    %v1073 = vld [vmem:[#allocation13 + $0x270] sm:$0xff]
    %v1074 = vld [vmem:[#allocation13 + $0x278] sm:$0xff]
    %v1075 = vld [vmem:[#allocation13 + $0x280] sm:$0xff]
    %v1076 = vld [vmem:[#allocation13 + $0x288] sm:$0xff]
    %v1077 = vld [vmem:[#allocation13 + $0x290] sm:$0xff]
    %v1078 = vld [vmem:[#allocation13 + $0x298] sm:$0xff]
    %v1079 = vld [vmem:[#allocation13 + $0x2a0] sm:$0xff]
    %v1080 = vld [vmem:[#allocation13 + $0x2a8] sm:$0xff]
    %v1081 = vld [vmem:[#allocation13 + $0x2b0] sm:$0xff]
    %v1082 = vld [vmem:[#allocation13 + $0x2b8] sm:$0xff]
    %v1083 = vld [vmem:[#allocation13 + $0x2c0] sm:$0xff]
    %v1084 = vld [vmem:[#allocation13 + $0x2c8] sm:$0xff]
    %v1085 = vld [vmem:[#allocation13 + $0x2d0] sm:$0xff]
    %v1086 = vld [vmem:[#allocation13 + $0x2d8] sm:$0xff]
    %v1087 = vld [vmem:[#allocation13 + $0x2e0] sm:$0xff]
    %v1088 = vld [vmem:[#allocation13 + $0x2e8] sm:$0xff]
    %v1089 = vld [vmem:[#allocation13 + $0x2f0] sm:$0xff]
    %v1090 = vld [vmem:[#allocation13 + $0x2f8] sm:$0xff]
    %v1091 = vld [vmem:[#allocation13 + $0x300] sm:$0xff]
    %v1092 = vld [vmem:[#allocation13 + $0x308] sm:$0xff]
    %v1093 = vld [vmem:[#allocation13 + $0x310] sm:$0xff]
    %v1094 = vld [vmem:[#allocation13 + $0x318] sm:$0xff]
    %v1095 = vld [vmem:[#allocation13 + $0x320] sm:$0xff]
    %v1096 = vld [vmem:[#allocation13 + $0x328] sm:$0xff]
    %v1097 = vld [vmem:[#allocation13 + $0x330] sm:$0xff]
    %v1098 = vld [vmem:[#allocation13 + $0x338] sm:$0xff]
    %v1099 = vld [vmem:[#allocation13 + $0x340] sm:$0xff]
    %v1100 = vld [vmem:[#allocation13 + $0x348] sm:$0xff]
    %v1101 = vld [vmem:[#allocation13 + $0x350] sm:$0xff]
    %v1102 = vld [vmem:[#allocation13 + $0x358] sm:$0xff]
    %v1103 = vld [vmem:[#allocation13 + $0x360] sm:$0xff]
    %v1104 = vld [vmem:[#allocation13 + $0x368] sm:$0xff]
    %v1105 = vld [vmem:[#allocation13 + $0x370] sm:$0xff]
    %v1106 = vld [vmem:[#allocation13 + $0x378] sm:$0xff]
    %v1107 = vld [vmem:[#allocation13 + $0x380] sm:$0xff]
    %v1108 = vld [vmem:[#allocation13 + $0x388] sm:$0xff]
    %v1109 = vld [vmem:[#allocation13 + $0x390] sm:$0xff]
    %v1110 = vld [vmem:[#allocation13 + $0x398] sm:$0xff]
    %v1111 = vld [vmem:[#allocation13 + $0x3a0] sm:$0xff]
    %v1112 = vld [vmem:[#allocation13 + $0x3a8] sm:$0xff]
    %v1113 = vld [vmem:[#allocation13 + $0x3b0] sm:$0xff]
    %v1114 = vld [vmem:[#allocation13 + $0x3b8] sm:$0xff]
    %v1115 = vld [vmem:[#allocation13 + $0x3c0] sm:$0xff]
    %v1116 = vld [vmem:[#allocation13 + $0x3c8] sm:$0xff]
    %v1117 = vld [vmem:[#allocation13 + $0x3d0] sm:$0xff]
    %v1118 = vld [vmem:[#allocation13 + $0x3d8] sm:$0xff]
    %v1119 = vld [vmem:[#allocation13 + $0x3e0] sm:$0xff]
    %v1120 = vld [vmem:[#allocation13 + $0x3e8] sm:$0xff]
    %v1121 = vld [vmem:[#allocation13 + $0x3f0] sm:$0xff]
    %v1122 = vld [vmem:[#allocation13 + $0x3f8] sm:$0xff]
    %v1125 = vcombine.high %v993, %v993
    %v1127 = vunpack.c.l.s4 1983009808
    %v1128 = vunpack.c.0.s8 %v1127
    %v1129 = vlaneseq
    %v1130 = vshrl.u32 %v1129, 7
    %v1131 = vsub.s32 %v1128, %v1130
    %v1132 = vrot.slane %v993, %v1131
    %v1134 = vunpack.c.l.s4 1983009808
    %v1135 = vunpack.c.0.s8 %v1134
    %v1136 = vlaneseq
    %v1137 = vshrl.u32 %v1136, 7
    %v1138 = vsub.s32 %v1135, %v1137
    %v1139 = vrot.slane %v1125, %v1138
    %v1140 = vcombine.high %v1132, %v1132
    %v1141 = vcombine.high %v1139, %v1139
    %v1142 = vcombine.high %v994, %v994
    %v1144 = vunpack.c.l.s4 1983009808
    %v1145 = vunpack.c.0.s8 %v1144
    %v1146 = vlaneseq
    %v1147 = vshrl.u32 %v1146, 7
    %v1148 = vsub.s32 %v1145, %v1147
    %v1149 = vrot.slane %v994, %v1148
    %v1151 = vunpack.c.l.s4 1983009808
    %v1152 = vunpack.c.0.s8 %v1151
    %v1153 = vlaneseq
    %v1154 = vshrl.u32 %v1153, 7
    %v1155 = vsub.s32 %v1152, %v1154
    %v1156 = vrot.slane %v1142, %v1155
    %v1157 = vcombine.high %v1149, %v1149
    %v1158 = vcombine.high %v1156, %v1156
    %1167 = vmatprep.subr.mxu0 0.0
    %1168 = vmatpush1.msra.mxu0 %v995
    %1169 = vmatprep.subr.mxu0 0.0
    %1170 = vmatpush1.msra.mxu0 %v996
    %1171 = vmatprep.subr.mxu0 0.0
    %1172 = vmatpush1.msra.mxu0 %v997
    %1173 = vmatprep.subr.mxu0 0.0
    %1174 = vmatpush1.msra.mxu0 %v998
    %1175 = vmatprep.subr.mxu0 0.0
    %1176 = vmatpush1.msra.mxu0 %v999
    %1177 = vmatprep.subr.mxu0 0.0
    %1178 = vmatpush1.msra.mxu0 %v1000
    %1179 = vmatprep.subr.mxu0 0.0
    %1180 = vmatpush1.msra.mxu0 %v1001
    %1181 = vmatprep.subr.mxu0 0.0
    %1182 = vmatpush1.msra.mxu0 %v1002
    %1183 = vmatprep.subr.mxu0 0.0
    %1184 = vmatpush1.msra.mxu0 %v1003
    %1185 = vmatprep.subr.mxu0 0.0
    %1186 = vmatpush1.msra.mxu0 %v1004
    %1187 = vmatprep.subr.mxu0 0.0
    %1188 = vmatpush1.msra.mxu0 %v1005
    %1189 = vmatprep.subr.mxu0 0.0
    %1190 = vmatpush1.msra.mxu0 %v1006
    %1191 = vmatprep.subr.mxu0 0.0
    %1192 = vmatpush1.msra.mxu0 %v1007
    %1193 = vmatprep.subr.mxu0 0.0
    %1194 = vmatpush1.msra.mxu0 %v1008
    %1195 = vmatprep.subr.mxu0 0.0
    %1196 = vmatpush1.msra.mxu0 %v1009
    %1197 = vmatprep.subr.mxu0 0.0
    %1198 = vmatpush1.msra.mxu0 %v1010
    %1199 = vmatprep.subr.mxu0 0.0
    %1200 = vmatpush1.msra.mxu0 %v1011
    %1201 = vmatprep.subr.mxu0 0.0
    %1202 = vmatpush1.msra.mxu0 %v1012
    %1203 = vmatprep.subr.mxu0 0.0
    %1204 = vmatpush1.msra.mxu0 %v1013
    %1205 = vmatprep.subr.mxu0 0.0
    %1206 = vmatpush1.msra.mxu0 %v1014
    %1207 = vmatprep.subr.mxu0 0.0
    %1208 = vmatpush1.msra.mxu0 %v1015
    %1209 = vmatprep.subr.mxu0 0.0
    %1210 = vmatpush1.msra.mxu0 %v1016
    %1211 = vmatprep.subr.mxu0 0.0
    %1212 = vmatpush1.msra.mxu0 %v1017
    %1213 = vmatprep.subr.mxu0 0.0
    %1214 = vmatpush1.msra.mxu0 %v1018
    %1215 = vmatprep.subr.mxu0 0.0
    %1216 = vmatpush1.msra.mxu0 %v1019
    %1217 = vmatprep.subr.mxu0 0.0
    %1218 = vmatpush1.msra.mxu0 %v1020
    %1219 = vmatprep.subr.mxu0 0.0
    %1220 = vmatpush1.msra.mxu0 %v1021
    %1221 = vmatprep.subr.mxu0 0.0
    %1222 = vmatpush1.msra.mxu0 %v1022
    %1223 = vmatprep.subr.mxu0 0.0
    %1224 = vmatpush1.msra.mxu0 %v1023
    %1225 = vmatprep.subr.mxu0 0.0
    %1226 = vmatpush1.msra.mxu0 %v1024
    %1227 = vmatprep.subr.mxu0 0.0
    %1228 = vmatpush1.msra.mxu0 %v1025
    %1229 = vmatprep.subr.mxu0 0.0
    %1230 = vmatpush1.msra.mxu0 %v1026
    %1231 = vmatprep.mubr.f32.mxu0 %v1140
    %1232 = vmatmul.mubr.f32.gmra.mrb[0].mxu0 %v1132
    %v1233 = vpop.f32.mrb[0].mxu0
    %v1234 = vadd.f32 0.0, %v1233
    %v1235 = vpop.f32.mrb[0].mxu0
    %1236 = vdwg.mxu0
    %1237 = vmatprep.subr.mxu0 0.0
    %1238 = vmatpush1.msra.mxu0 %v1027
    %1239 = vmatprep.subr.mxu0 0.0
    %1240 = vmatpush1.msra.mxu0 %v1028
    %1241 = vmatprep.subr.mxu0 0.0
    %1242 = vmatpush1.msra.mxu0 %v1029
    %1243 = vmatprep.subr.mxu0 0.0
    %1244 = vmatpush1.msra.mxu0 %v1030
    %1245 = vmatprep.subr.mxu0 0.0
    %1246 = vmatpush1.msra.mxu0 %v1031
    %1247 = vmatprep.subr.mxu0 0.0
    %1248 = vmatpush1.msra.mxu0 %v1032
    %1249 = vmatprep.subr.mxu0 0.0
    %1250 = vmatpush1.msra.mxu0 %v1033
    %1251 = vmatprep.subr.mxu0 0.0
    %1252 = vmatpush1.msra.mxu0 %v1034
    %1253 = vmatprep.subr.mxu0 0.0
    %1254 = vmatpush1.msra.mxu0 %v1035
    %1255 = vmatprep.subr.mxu0 0.0
    %1256 = vmatpush1.msra.mxu0 %v1036
    %1257 = vmatprep.subr.mxu0 0.0
    %1258 = vmatpush1.msra.mxu0 %v1037
    %1259 = vmatprep.subr.mxu0 0.0
    %1260 = vmatpush1.msra.mxu0 %v1038
    %1261 = vmatprep.subr.mxu0 0.0
    %1262 = vmatpush1.msra.mxu0 %v1039
    %1263 = vmatprep.subr.mxu0 0.0
    %1264 = vmatpush1.msra.mxu0 %v1040
    %1265 = vmatprep.subr.mxu0 0.0
    %1266 = vmatpush1.msra.mxu0 %v1041
    %1267 = vmatprep.subr.mxu0 0.0
    %1268 = vmatpush1.msra.mxu0 %v1042
    %1269 = vmatprep.subr.mxu0 0.0
    %1270 = vmatpush1.msra.mxu0 %v1043
    %1271 = vmatprep.subr.mxu0 0.0
    %1272 = vmatpush1.msra.mxu0 %v1044
    %1273 = vmatprep.subr.mxu0 0.0
    %1274 = vmatpush1.msra.mxu0 %v1045
    %1275 = vmatprep.subr.mxu0 0.0
    %1276 = vmatpush1.msra.mxu0 %v1046
    %1277 = vmatprep.subr.mxu0 0.0
    %1278 = vmatpush1.msra.mxu0 %v1047
    %1279 = vmatprep.subr.mxu0 0.0
    %1280 = vmatpush1.msra.mxu0 %v1048
    %1281 = vmatprep.subr.mxu0 0.0
    %1282 = vmatpush1.msra.mxu0 %v1049
    %1283 = vmatprep.subr.mxu0 0.0
    %1284 = vmatpush1.msra.mxu0 %v1050
    %1285 = vmatprep.subr.mxu0 0.0
    %1286 = vmatpush1.msra.mxu0 %v1051
    %1287 = vmatprep.subr.mxu0 0.0
    %1288 = vmatpush1.msra.mxu0 %v1052
    %1289 = vmatprep.subr.mxu0 0.0
    %1290 = vmatpush1.msra.mxu0 %v1053
    %1291 = vmatprep.subr.mxu0 0.0
    %1292 = vmatpush1.msra.mxu0 %v1054
    %1293 = vmatprep.subr.mxu0 0.0
    %1294 = vmatpush1.msra.mxu0 %v1055
    %1295 = vmatprep.subr.mxu0 0.0
    %1296 = vmatpush1.msra.mxu0 %v1056
    %1297 = vmatprep.subr.mxu0 0.0
    %1298 = vmatpush1.msra.mxu0 %v1057
    %1299 = vmatprep.subr.mxu0 0.0
    %1300 = vmatpush1.msra.mxu0 %v1058
    %1301 = vmatprep.mubr.f32.mxu0 %v1141
    %1302 = vmatmul.mubr.f32.gmra.mrb[0].mxu0 %v1139
    %v1303 = vpop.f32.mrb[0].mxu0
    %v1304 = vadd.f32 %v1234, %v1303
    %v1305 = vpop.f32.mrb[0].mxu0
    %1306 = vdwg.mxu0
    %1307 = vmatprep.subr.mxu0 0.0
    %1308 = vmatpush1.msra.mxu0 %v1059
    %1309 = vmatprep.subr.mxu0 0.0
    %1310 = vmatpush1.msra.mxu0 %v1060
    %1311 = vmatprep.subr.mxu0 0.0
    %1312 = vmatpush1.msra.mxu0 %v1061
    %1313 = vmatprep.subr.mxu0 0.0
    %1314 = vmatpush1.msra.mxu0 %v1062
    %1315 = vmatprep.subr.mxu0 0.0
    %1316 = vmatpush1.msra.mxu0 %v1063
    %1317 = vmatprep.subr.mxu0 0.0
    %1318 = vmatpush1.msra.mxu0 %v1064
    %1319 = vmatprep.subr.mxu0 0.0
    %1320 = vmatpush1.msra.mxu0 %v1065
    %1321 = vmatprep.subr.mxu0 0.0
    %1322 = vmatpush1.msra.mxu0 %v1066
    %1323 = vmatprep.subr.mxu0 0.0
    %1324 = vmatpush1.msra.mxu0 %v1067
    %1325 = vmatprep.subr.mxu0 0.0
    %1326 = vmatpush1.msra.mxu0 %v1068
    %1327 = vmatprep.subr.mxu0 0.0
    %1328 = vmatpush1.msra.mxu0 %v1069
    %1329 = vmatprep.subr.mxu0 0.0
    %1330 = vmatpush1.msra.mxu0 %v1070
    %1331 = vmatprep.subr.mxu0 0.0
    %1332 = vmatpush1.msra.mxu0 %v1071
    %1333 = vmatprep.subr.mxu0 0.0
    %1334 = vmatpush1.msra.mxu0 %v1072
    %1335 = vmatprep.subr.mxu0 0.0
    %1336 = vmatpush1.msra.mxu0 %v1073
    %1337 = vmatprep.subr.mxu0 0.0
    %1338 = vmatpush1.msra.mxu0 %v1074
    %1339 = vmatprep.subr.mxu0 0.0
    %1340 = vmatpush1.msra.mxu0 %v1075
    %1341 = vmatprep.subr.mxu0 0.0
    %1342 = vmatpush1.msra.mxu0 %v1076
    %1343 = vmatprep.subr.mxu0 0.0
    %1344 = vmatpush1.msra.mxu0 %v1077
    %1345 = vmatprep.subr.mxu0 0.0
    %1346 = vmatpush1.msra.mxu0 %v1078
    %1347 = vmatprep.subr.mxu0 0.0
    %1348 = vmatpush1.msra.mxu0 %v1079
    %1349 = vmatprep.subr.mxu0 0.0
    %1350 = vmatpush1.msra.mxu0 %v1080
    %1351 = vmatprep.subr.mxu0 0.0
    %1352 = vmatpush1.msra.mxu0 %v1081
    %1353 = vmatprep.subr.mxu0 0.0
    %1354 = vmatpush1.msra.mxu0 %v1082
    %1355 = vmatprep.subr.mxu0 0.0
    %1356 = vmatpush1.msra.mxu0 %v1083
    %1357 = vmatprep.subr.mxu0 0.0
    %1358 = vmatpush1.msra.mxu0 %v1084
    %1359 = vmatprep.subr.mxu0 0.0
    %1360 = vmatpush1.msra.mxu0 %v1085
    %1361 = vmatprep.subr.mxu0 0.0
    %1362 = vmatpush1.msra.mxu0 %v1086
    %1363 = vmatprep.subr.mxu0 0.0
    %1364 = vmatpush1.msra.mxu0 %v1087
    %1365 = vmatprep.subr.mxu0 0.0
    %1366 = vmatpush1.msra.mxu0 %v1088
    %1367 = vmatprep.subr.mxu0 0.0
    %1368 = vmatpush1.msra.mxu0 %v1089
    %1369 = vmatprep.subr.mxu0 0.0
    %1370 = vmatpush1.msra.mxu0 %v1090
    %1371 = vmatprep.mubr.f32.mxu0 %v1157
    %1372 = vmatmul.mubr.f32.gmra.mrb[0].mxu0 %v1149
    %v1373 = vpop.f32.mrb[0].mxu0
    %v1374 = vadd.f32 %v1304, %v1373
    %v1375 = vpop.f32.mrb[0].mxu0
    %1376 = vdwg.mxu0
    %1377 = vmatprep.subr.mxu0 0.0
    %1378 = vmatpush1.msra.mxu0 %v1091
    %1379 = vmatprep.subr.mxu0 0.0
    %1380 = vmatpush1.msra.mxu0 %v1092
    %1381 = vmatprep.subr.mxu0 0.0
    %1382 = vmatpush1.msra.mxu0 %v1093
    %1383 = vmatprep.subr.mxu0 0.0
    %1384 = vmatpush1.msra.mxu0 %v1094
    %1385 = vmatprep.subr.mxu0 0.0
    %1386 = vmatpush1.msra.mxu0 %v1095
    %1387 = vmatprep.subr.mxu0 0.0
    %1388 = vmatpush1.msra.mxu0 %v1096
    %1389 = vmatprep.subr.mxu0 0.0
    %1390 = vmatpush1.msra.mxu0 %v1097
    %1391 = vmatprep.subr.mxu0 0.0
    %1392 = vmatpush1.msra.mxu0 %v1098
    %1393 = vmatprep.subr.mxu0 0.0
    %1394 = vmatpush1.msra.mxu0 %v1099
    %1395 = vmatprep.subr.mxu0 0.0
    %1396 = vmatpush1.msra.mxu0 %v1100
    %1397 = vmatprep.subr.mxu0 0.0
    %1398 = vmatpush1.msra.mxu0 %v1101
    %1399 = vmatprep.subr.mxu0 0.0
    %1400 = vmatpush1.msra.mxu0 %v1102
    %1401 = vmatprep.subr.mxu0 0.0
    %1402 = vmatpush1.msra.mxu0 %v1103
    %1403 = vmatprep.subr.mxu0 0.0
    %1404 = vmatpush1.msra.mxu0 %v1104
    %1405 = vmatprep.subr.mxu0 0.0
    %1406 = vmatpush1.msra.mxu0 %v1105
    %1407 = vmatprep.subr.mxu0 0.0
    %1408 = vmatpush1.msra.mxu0 %v1106
    %1409 = vmatprep.subr.mxu0 0.0
    %1410 = vmatpush1.msra.mxu0 %v1107
    %1411 = vmatprep.subr.mxu0 0.0
    %1412 = vmatpush1.msra.mxu0 %v1108
    %1413 = vmatprep.subr.mxu0 0.0
    %1414 = vmatpush1.msra.mxu0 %v1109
    %1415 = vmatprep.subr.mxu0 0.0
    %1416 = vmatpush1.msra.mxu0 %v1110
    %1417 = vmatprep.subr.mxu0 0.0
    %1418 = vmatpush1.msra.mxu0 %v1111
    %1419 = vmatprep.subr.mxu0 0.0
    %1420 = vmatpush1.msra.mxu0 %v1112
    %1421 = vmatprep.subr.mxu0 0.0
    %1422 = vmatpush1.msra.mxu0 %v1113
    %1423 = vmatprep.subr.mxu0 0.0
    %1424 = vmatpush1.msra.mxu0 %v1114
    %1425 = vmatprep.subr.mxu0 0.0
    %1426 = vmatpush1.msra.mxu0 %v1115
    %1427 = vmatprep.subr.mxu0 0.0
    %1428 = vmatpush1.msra.mxu0 %v1116
    %1429 = vmatprep.subr.mxu0 0.0
    %1430 = vmatpush1.msra.mxu0 %v1117
    %1431 = vmatprep.subr.mxu0 0.0
    %1432 = vmatpush1.msra.mxu0 %v1118
    %1433 = vmatprep.subr.mxu0 0.0
    %1434 = vmatpush1.msra.mxu0 %v1119
    %1435 = vmatprep.subr.mxu0 0.0
    %1436 = vmatpush1.msra.mxu0 %v1120
    %1437 = vmatprep.subr.mxu0 0.0
    %1438 = vmatpush1.msra.mxu0 %v1121
    %1439 = vmatprep.subr.mxu0 0.0
    %1440 = vmatpush1.msra.mxu0 %v1122
    %1441 = vmatprep.mubr.f32.mxu0 %v1158
    %1442 = vmatmul.mubr.f32.gmra.mrb[0].mxu0 %v1156
    %v1443 = vpop.f32.mrb[0].mxu0
    %v1444 = vadd.f32 %v1374, %v1443
    %v1445 = vpop.f32.mrb[0].mxu0
    %1446 = vdwg.mxu0
    %vm1447 = vcmask 123904
    %1448 = vst.msk [vmem:[#allocation14] sm:$0x3] %vm1447, %v1444
    // Predicated region
    $region42: #{network_forward.1} parent=1 // pred_check
      _
    $region43: #{network_forward.1} parent=1 // pred_check_branch
      %1450 = sbr.rel (0) target = $region45
    $region44: #{network_forward.1} parent=1 // pred_region
      %s1452 = ssub.s32 32, 32
      %1453 = vsyncadd [#allocation7], %s1452
      %s1455 = sshll.u32 [#allocation14], 4
      %s1456 = int_to_ptr.vmem [resolvable:$true] %s1455
      %1458 = dma.vmem_to_hbm [thread:$0]  %s1456, 32, %s5, [#allocation7]
    $region45: #{network_forward.1} parent=1 // pred_fallthru
      _
    // Predicated region
    $region46: #{network_forward.1} parent=1 // pred_check
      _
    $region47: #{network_forward.1} parent=1 // pred_check_branch
      %1460 = sbr.rel (0) target = $region49
    $region48: #{network_forward.1} parent=1 // pred_region
      %1461 = dma.done [#allocation7], 32
    $region49: #{network_forward.1} parent=1 // pred_fallthru
      _
    %1462 = vsyncpa [#allocation6], 1
    %1463 = vsyncpa [#allocation9], 1
    %1464 = vsyncpa [#allocation12], 1
    %1465 = vsyncpa [#allocation7], 1

</llo_original>
